<compile_context>
chip_gen: v7x
topology: tpu7x:2x2x1
jax: 0.10.0
libtpu: 0.0.40
codegen_flags: <defaults>
</compile_context>

<pallas_src>
import functools

import jax
import jax.numpy as jnp
from jax.experimental import pallas as pl
from jax.experimental.pallas import tpu as pltpu

F32 = jnp.float32
BF16 = jnp.bfloat16

ENC_DIM = 256              # every encoder emits 256 features
DRUG_DIM = 143
ADD_DIM = 2 + 61 + 5       # bbox + doctor + quantity
LANE = 128


def _round_up(x, m):
    return ((x + m - 1) // m) * m


def _choose_hw_tile(hw, tb, c, budget_bytes=8 * 1024 * 1024):
    """Largest multiple-of-128 divisor of hw whose bf16 image block fits budget."""
    best = None
    t = LANE
    while t <= hw:
        if hw % t == 0 and tb * c * t * 2 <= budget_bytes:
            best = t
        t += LANE
    return best if best is not None else hw


# ---------------------------------------------------------------------------
# Kernel: tiled GAP accumulation + 2 fused encoder matmuls + 1 output matmul +
# log_softmax.  Output block index is constant along the HW grid axis, so the
# output tile stays resident until the last HW step writes it.
# ---------------------------------------------------------------------------
def _drug_cls_kernel(
    inv_hw,       # python float, 1 / (H*W)
    img_ref,      # [TB, C, THW]    bf16
    act_ref,      # [TB, K_pad]     bf16  (diag | drugnames | bbox,doctor,qty | 0)
    wi_ref,       # [C, 256]        bf16
    bi_ref,       # [1, 256]        f32
    wf_ref,       # [K_pad, 768]    bf16  block-diagonal (diag / drug / additional)
    bf_ref,       # [1, 768]        f32
    wo_ref,       # [1024, NC_pad]  bf16
    bo_ref,       # [1, NC_pad]     f32   (padded classes carry -1e30)
    out_ref,      # [TB, NC_pad]    f32
    pool_acc,     # [TB, C]         f32 scratch (GAP accumulator)
):
    hi = pl.program_id(1)
    n_hw = pl.num_programs(1)

    @pl.when(hi == 0)
    def _():
        pool_acc[...] = jnp.zeros_like(pool_acc)

    # Partial global-average-pool: accumulate the HW-tile sum in f32.
    pool_acc[...] += jnp.sum(img_ref[...].astype(F32), axis=-1)

    @pl.when(hi == n_hw - 1)
    def _():
        # ---- ImageEncoder stand-in: GAP -> Linear(C,256) -> ReLU ----------
        pooled = (pool_acc[...] * inv_hw).astype(BF16)                     # [TB, C]
        f_img = jnp.dot(pooled, wi_ref[...], preferred_element_type=F32)
        f_img = jnp.maximum(f_img + bi_ref[...], 0.0)                      # [TB, 256]

        # ---- diag / drugname / additional encoders: ONE block-diag matmul -
        f_oth = jnp.dot(act_ref[...], wf_ref[...], preferred_element_type=F32)
        f_oth = f_oth + bf_ref[...]                                        # [TB, 768]
        f_diag = f_oth[:, 0:ENC_DIM]                    # no activation (stand-in)
        f_rest = jnp.maximum(f_oth[:, ENC_DIM:3 * ENC_DIM], 0.0)  # ReLU(drug|add)

        # ---- lane-aligned concat + single output Linear -------------------
        feats = jnp.concatenate([f_img, f_diag, f_rest], axis=1).astype(BF16)
        logits = jnp.dot(feats, wo_ref[...], preferred_element_type=F32) + bo_ref[...]

        # ---- log_softmax over classes (pad lanes -> exp underflows to 0) --
        m = jnp.max(logits, axis=1, keepdims=True)
        shifted = logits - m
        lse = jnp.log(jnp.sum(jnp.exp(shifted), axis=1, keepdims=True))
        out_ref[...] = shifted - lse


# ---------------------------------------------------------------------------
# Wrapper
# ---------------------------------------------------------------------------
@functools.partial(jax.jit, static_argnames=("num_classes", "hw_tile"))
def drug_classification_forward(
    image_input,      # [B, C, H, W]  (NCHW, PyTorch convention)
    diagnose_input,   # [B, Db]       pooled BERT embedding stand-in
    drugnames_input,  # [B, 143]
    bbox_input,       # [B, 2]
    doctor_input,     # [B, 61]
    quantity_input,   # [B, 5]
    fused,            # dict from fuse_params()
    *,
    num_classes,
    hw_tile=None,     # optional static override of the HW tile size
):
    B, C, H, W = image_input.shape
    HW = H * W
    Db = diagnose_input.shape[1]
    K_raw = Db + DRUG_DIM + ADD_DIM
    K_pad = fused["w_fused"].shape[0]
    NC_pad = fused["w_out"].shape[1]

    # Batch tiling (pad to the tile if B > 128).
    if B <= 128:
        TB, B_pad = B, B
    else:
        TB = 128
        B_pad = _round_up(B, TB)

    THW = hw_tile if hw_tile is not None else _choose_hw_tile(HW, TB, C)
    assert HW % THW == 0, "hw_tile must divide H*W"

    # Glue (plain JAX): NCHW -> [B, C, HW]; pre-concat all non-image features.
    img = image_input.reshape(B, C, HW).astype(BF16)
    act = jnp.concatenate(
        [diagnose_input, drugnames_input, bbox_input, doctor_input, quantity_input],
        axis=1,
    ).astype(BF16)                                              # [B, K_raw]
    act = jnp.pad(act, ((0, B_pad - B), (0, K_pad - K_raw)))
    if B_pad > B:
        img = jnp.pad(img, ((0, B_pad - B), (0, 0), (0, 0)))

    grid = (B_pad // TB, HW // THW)
    kernel = functools.partial(_drug_cls_kernel, 1.0 / float(HW))

    out = pl.pallas_call(
        kernel,
        out_shape=jax.ShapeDtypeStruct((B_pad, NC_pad), F32),
        grid=grid,
        in_specs=[
            pl.BlockSpec((TB, C, THW), lambda bi, hi: (bi, 0, hi)),       # image tile
            pl.BlockSpec((TB, K_pad), lambda bi, hi: (bi, 0)),            # fused acts
            pl.BlockSpec((C, ENC_DIM), lambda bi, hi: (0, 0)),            # w_img
            pl.BlockSpec((1, ENC_DIM), lambda bi, hi: (0, 0)),            # b_img
            pl.BlockSpec((K_pad, 3 * ENC_DIM), lambda bi, hi: (0, 0)),    # w_fused
            pl.BlockSpec((1, 3 * ENC_DIM), lambda bi, hi: (0, 0)),        # b_fused
            pl.BlockSpec((4 * ENC_DIM, NC_pad), lambda bi, hi: (0, 0)),   # w_out
            pl.BlockSpec((1, NC_pad), lambda bi, hi: (0, 0)),             # b_out
        ],
        out_specs=pl.BlockSpec((TB, NC_pad), lambda bi, hi: (bi, 0)),
        scratch_shapes=[pltpu.VMEM((TB, C), F32)],
        compiler_params=pltpu.CompilerParams(
            dimension_semantics=("parallel", "arbitrary"),
            vmem_limit_bytes=48 * 1024 * 1024,
        ),
    )(
        img, act,
        fused["w_img"], fused["b_img"],
        fused["w_fused"], fused["b_fused"],
        fused["w_out"], fused["b_out"],
    )

    return out[:B, :num_classes]


# ---------------------------------------------------------------------------
# Parameter construction
# ---------------------------------------------------------------------------
def init_params(key, *, img_channels, bert_dim, num_classes):
    """Deterministic synthetic parameter init (PyTorch-style Linear init)."""
    ks = jax.random.split(key, 10)

    def lin(kw, kb, fan_in, fan_out):
        s = 1.0 / jnp.sqrt(jnp.float32(fan_in))
        w = jax.random.uniform(kw, (fan_in, fan_out), F32, -s, s)
        b = jax.random.uniform(kb, (1, fan_out), F32, -s, s)
        return w, b

    w_img, b_img = lin(ks[0], ks[1], img_channels, ENC_DIM)
    w_diag, b_diag = lin(ks[2], ks[3], bert_dim, ENC_DIM)
    w_drug, b_drug = lin(ks[4], ks[5], DRUG_DIM, ENC_DIM)
    w_add, b_add = lin(ks[6], ks[7], ADD_DIM, ENC_DIM)
    w_out, b_out = lin(ks[8], ks[9], 4 * ENC_DIM, num_classes)
    return dict(w_img=w_img, b_img=b_img, w_diag=w_diag, b_diag=b_diag,
                w_drug=w_drug, b_drug=b_drug, w_add=w_add, b_add=b_add,
                w_out=w_out, b_out=b_out)


def fuse_params(p, *, bert_dim):
    """One-time fusion: block-diagonal encoder weight + lane-padded output head."""
    K_raw = bert_dim + DRUG_DIM + ADD_DIM
    K_pad = _round_up(K_raw, LANE)
    nc = p["w_out"].shape[1]
    NC_pad = _round_up(max(nc, LANE), LANE)

    w_fused = jnp.zeros((K_pad, 3 * ENC_DIM), F32)
    w_fused = w_fused.at[0:bert_dim, 0:ENC_DIM].set(p["w_diag"])
    w_fused = w_fused.at[bert_dim:bert_dim + DRUG_DIM,
                         ENC_DIM:2 * ENC_DIM].set(p["w_drug"])
    w_fused = w_fused.at[bert_dim + DRUG_DIM:K_raw,
                         2 * ENC_DIM:3 * ENC_DIM].set(p["w_add"])
    b_fused = jnp.concatenate([p["b_diag"], p["b_drug"], p["b_add"]], axis=1)

    w_out = jnp.zeros((4 * ENC_DIM, NC_pad), F32).at[:, :nc].set(p["w_out"])
    # Padded classes get a hugely negative bias so exp() underflows to 0 exactly.
    b_out = jnp.full((1, NC_pad), -1e30, F32).at[:, :nc].set(p["b_out"])

    return dict(
        w_img=p["w_img"].astype(BF16), b_img=p["b_img"],
        w_fused=w_fused.astype(BF16), b_fused=b_fused,
        w_out=w_out.astype(BF16), b_out=b_out,
    )


# ---------------------------------------------------------------------------
# Pure-JAX reference (f32, unfused) for correctness checking
# ---------------------------------------------------------------------------
def reference_forward(image, diag, drug, bbox, doctor, qty, p):
    B, C, H, W = image.shape
    pooled = image.reshape(B, C, H * W).mean(axis=-1)
    f_img = jax.nn.relu(pooled @ p["w_img"] + p["b_img"])
    f_diag = diag @ p["w_diag"] + p["b_diag"]
    f_drug = jax.nn.relu(drug @ p["w_drug"] + p["b_drug"])
    add = jnp.concatenate([bbox, doctor, qty], axis=1)
    f_add = jax.nn.relu(add @ p["w_add"] + p["b_add"])
    feats = jnp.concatenate([f_img, f_diag, f_drug, f_add], axis=1)
    logits = feats @ p["w_out"] + p["b_out"]
    return jax.nn.log_softmax(logits, axis=1)


if __name__ == "__main__":
    B, C, H, W = 2, 4, 16, 16      # small NCHW image input
    BERT_DIM = 32                  # pooled BERT embedding stand-in
    NUM_CLASSES = 16

    key = jax.random.PRNGKey(0)
    k_img, k_diag, k_drug, k_bbox, k_doc, k_qty, k_par = jax.random.split(key, 7)

    image_input = jax.random.normal(k_img, (B, C, H, W), F32)
    diagnose_input = jax.random.normal(k_diag, (B, BERT_DIM), F32)
    drugnames_input = jax.random.normal(k_drug, (B, DRUG_DIM), F32)
    bbox_input = jax.random.normal(k_bbox, (B, 2), F32)
    doctor_input = jax.random.normal(k_doc, (B, 61), F32)
    quantity_input = jax.random.normal(k_qty, (B, 5), F32)

    params = init_params(k_par, img_channels=C, bert_dim=BERT_DIM,
                         num_classes=NUM_CLASSES)
    fused = fuse_params(params, bert_dim=BERT_DIM)

    # hw_tile=128 -> grid=(1, 2): exercises the tiled-GAP accumulation path.
    out = drug_classification_forward(
        image_input, diagnose_input, drugnames_input,
        bbox_input, doctor_input, quantity_input,
        fused, num_classes=NUM_CLASSES, hw_tile=128,
    )
    out = jax.block_until_ready(out)

    assert out.shape == (B, NUM_CLASSES)
    # log_softmax rows must (log-)sum to ~0
    row_lse = jax.nn.logsumexp(out, axis=1)
    assert jnp.all(jnp.abs(row_lse) < 1e-3)

    # Numerical check against the pure-JAX f32 reference (bf16 matmul tolerance).
    ref = reference_forward(image_input, diagnose_input, drugnames_input,
                            bbox_input, doctor_input, quantity_input, params)
    max_err = float(jnp.max(jnp.abs(out - ref)))
    assert max_err < 0.1, f"max abs error vs reference too large: {max_err}"

    print("KERNEL_OK")
</pallas_src>

<mosaic_0001>
module attributes {stable_mosaic.version = 11 : i64} {
  func.func @_drug_cls_kernel(%arg0: i32, %arg1: i32, %arg2: memref<2x4x128xbf16, #tpu.memory_space<vmem>>, %arg3: memref<2x256xbf16, #tpu.memory_space<vmem>>, %arg4: memref<4x256xbf16, #tpu.memory_space<vmem>>, %arg5: memref<1x256xf32, #tpu.memory_space<vmem>>, %arg6: memref<256x768xbf16, #tpu.memory_space<vmem>>, %arg7: memref<1x768xf32, #tpu.memory_space<vmem>>, %arg8: memref<1024x128xbf16, #tpu.memory_space<vmem>>, %arg9: memref<1x128xf32, #tpu.memory_space<vmem>>, %arg10: memref<2x128xf32, #tpu.memory_space<vmem>>, %arg11: memref<2x4xf32, #tpu.memory_space<vmem>>) attributes {dimension_semantics = [#tpu.dimension_semantics<parallel>, #tpu.dimension_semantics<arbitrary>], iteration_bounds = array<i64: 1, 2>, scalar_prefetch = 0 : i64, scratch_operands = 1 : i64, tpu.core_type = #tpu.core_type<tc>, window_params = [{transform_indices = @transform_0, window_bounds = array<i64: 2, 4, 128>}, {transform_indices = @transform_1, window_bounds = array<i64: 2, 256>}, {pipeline_mode = #tpu.pipeline_mode<synchronous>, transform_indices = @transform_2, window_bounds = array<i64: 4, 256>}, {pipeline_mode = #tpu.pipeline_mode<synchronous>, transform_indices = @transform_3, window_bounds = array<i64: 1, 256>}, {pipeline_mode = #tpu.pipeline_mode<synchronous>, transform_indices = @transform_4, window_bounds = array<i64: 256, 768>}, {pipeline_mode = #tpu.pipeline_mode<synchronous>, transform_indices = @transform_5, window_bounds = array<i64: 1, 768>}, {pipeline_mode = #tpu.pipeline_mode<synchronous>, transform_indices = @transform_6, window_bounds = array<i64: 1024, 128>}, {pipeline_mode = #tpu.pipeline_mode<synchronous>, transform_indices = @transform_7, window_bounds = array<i64: 1, 128>}, {transform_indices = @transform_8, window_bounds = array<i64: 2, 128>}]} {
    %c0_i32 = arith.constant 0 : i32
    %0 = arith.cmpi eq, %arg1, %c0_i32 : i32
    %1 = arith.extui %0 : i1 to i32
    %c0_i32_0 = arith.constant 0 : i32
    %2 = arith.cmpi ne, %1, %c0_i32_0 : i32
    scf.if %2 {
      %cst_8 = arith.constant 0.000000e+00 : f32
      %12 = vector.broadcast %cst_8 : f32 to vector<2x4xf32>
      %c0_9 = arith.constant 0 : index
      %c0_10 = arith.constant 0 : index
      %13 = vector.load %arg11[%c0_9, %c0_10] : memref<2x4xf32, #tpu.memory_space<vmem>>, vector<2x4xf32>
      tpu.vector_store %arg11[%c0_9, %c0_10], %12 {strides = array<i32>} : memref<2x4xf32, #tpu.memory_space<vmem>>, vector<2x4xf32>,
    } else {
    }
    %c0 = arith.constant 0 : index
    %c0_1 = arith.constant 0 : index
    %3 = vector.load %arg11[%c0, %c0_1] : memref<2x4xf32, #tpu.memory_space<vmem>>, vector<2x4xf32>
    %c0_2 = arith.constant 0 : index
    %c0_3 = arith.constant 0 : index
    %c0_4 = arith.constant 0 : index
    %4 = vector.load %arg2[%c0_2, %c0_3, %c0_4] : memref<2x4x128xbf16, #tpu.memory_space<vmem>>, vector<2x4x128xbf16>
    %5 = arith.extf %4 : vector<2x4x128xbf16> to vector<2x4x128xf32>
    %cst = arith.constant dense<0.000000e+00> : vector<2x4xf32>
    %6 = vector.multi_reduction <add>, %5, %cst [2] : vector<2x4x128xf32> to vector<2x4xf32>
    %7 = arith.addf %3, %6 : vector<2x4xf32>
    %c0_5 = arith.constant 0 : index
    %c0_6 = arith.constant 0 : index
    %8 = vector.load %arg11[%c0_5, %c0_6] : memref<2x4xf32, #tpu.memory_space<vmem>>, vector<2x4xf32>
    tpu.vector_store %arg11[%c0_5, %c0_6], %7 {strides = array<i32>} : memref<2x4xf32, #tpu.memory_space<vmem>>, vector<2x4xf32>,
    %c1_i32 = arith.constant 1 : i32
    %9 = arith.cmpi eq, %arg1, %c1_i32 : i32
    %10 = arith.extui %9 : i1 to i32
    %c0_i32_7 = arith.constant 0 : i32
    %11 = arith.cmpi ne, %10, %c0_i32_7 : i32
    scf.if %11 {
      %c0_8 = arith.constant 0 : index
      %c0_9 = arith.constant 0 : index
      %12 = vector.load %arg11[%c0_8, %c0_9] : memref<2x4xf32, #tpu.memory_space<vmem>>, vector<2x4xf32>
      %cst_10 = arith.constant 3.906250e-03 : f32
      %13 = vector.broadcast %cst_10 : f32 to vector<2x4xf32>
      %14 = arith.mulf %12, %13 : vector<2x4xf32>
      %15 = arith.truncf %14 : vector<2x4xf32> to vector<2x4xbf16>
      %c0_11 = arith.constant 0 : index
      %c0_12 = arith.constant 0 : index
      %16 = vector.load %arg4[%c0_11, %c0_12] : memref<4x256xbf16, #tpu.memory_space<vmem>>, vector<4x256xbf16>
      %cst_13 = arith.constant dense<0.000000e+00> : vector<2x256xf32>
      %17 = tpu.matmul %15, %16, %cst_13 {dimension_numbers = #tpu.dot_dimension_numbers<[1], [0], [0], [1], [0, 0, 1, 1], [], []>} : vector<2x4xbf16>, vector<4x256xbf16>, vector<2x256xf32> -> vector<2x256xf32>
      %c0_14 = arith.constant 0 : index
      %c0_15 = arith.constant 0 : index
      %18 = vector.load %arg5[%c0_14, %c0_15] : memref<1x256xf32, #tpu.memory_space<vmem>>, vector<1x256xf32>
      %19 = vector.broadcast %18 : vector<1x256xf32> to vector<2x256xf32>
      %20 = arith.addf %17, %19 : vector<2x256xf32>
      %cst_16 = arith.constant 0.000000e+00 : f32
      %21 = vector.broadcast %cst_16 : f32 to vector<2x256xf32>
      %22 = arith.maximumf %20, %21 : vector<2x256xf32>
      %c0_17 = arith.constant 0 : index
      %c0_18 = arith.constant 0 : index
      %23 = vector.load %arg3[%c0_17, %c0_18] : memref<2x256xbf16, #tpu.memory_space<vmem>>, vector<2x256xbf16>
      %c0_19 = arith.constant 0 : index
      %c0_20 = arith.constant 0 : index
      %24 = vector.load %arg6[%c0_19, %c0_20] : memref<256x768xbf16, #tpu.memory_space<vmem>>, vector<256x768xbf16>
      %cst_21 = arith.constant dense<0.000000e+00> : vector<2x768xf32>
      %25 = tpu.matmul %23, %24, %cst_21 {dimension_numbers = #tpu.dot_dimension_numbers<[1], [0], [0], [1], [0, 0, 1, 1], [], []>} : vector<2x256xbf16>, vector<256x768xbf16>, vector<2x768xf32> -> vector<2x768xf32>
      %c0_22 = arith.constant 0 : index
      %c0_23 = arith.constant 0 : index
      %26 = vector.load %arg7[%c0_22, %c0_23] : memref<1x768xf32, #tpu.memory_space<vmem>>, vector<1x768xf32>
      %27 = vector.broadcast %26 : vector<1x768xf32> to vector<2x768xf32>
      %28 = arith.addf %25, %27 : vector<2x768xf32>
      %29 = vector.extract_strided_slice %28 {offsets = [0, 0], sizes = [2, 256], strides = [1, 1]} : vector<2x768xf32> to vector<2x256xf32>
      %30 = vector.extract_strided_slice %28 {offsets = [0, 256], sizes = [2, 512], strides = [1, 1]} : vector<2x768xf32> to vector<2x512xf32>
      %cst_24 = arith.constant 0.000000e+00 : f32
      %31 = vector.broadcast %cst_24 : f32 to vector<2x512xf32>
      %32 = arith.maximumf %30, %31 : vector<2x512xf32>
      %33 = tpu.concatenate %22, %29, %32 in 1 : vector<2x256xf32>, vector<2x256xf32>, vector<2x512xf32> -> vector<2x1024xf32>
      %34 = arith.truncf %33 : vector<2x1024xf32> to vector<2x1024xbf16>
      %c0_25 = arith.constant 0 : index
      %c0_26 = arith.constant 0 : index
      %35 = vector.load %arg8[%c0_25, %c0_26] : memref<1024x128xbf16, #tpu.memory_space<vmem>>, vector<1024x128xbf16>
      %cst_27 = arith.constant dense<0.000000e+00> : vector<2x128xf32>
      %36 = tpu.matmul %34, %35, %cst_27 {dimension_numbers = #tpu.dot_dimension_numbers<[1], [0], [0], [1], [0, 0, 1, 1], [], []>} : vector<2x1024xbf16>, vector<1024x128xbf16>, vector<2x128xf32> -> vector<2x128xf32>
      %c0_28 = arith.constant 0 : index
      %c0_29 = arith.constant 0 : index
      %37 = vector.load %arg9[%c0_28, %c0_29] : memref<1x128xf32, #tpu.memory_space<vmem>>, vector<1x128xf32>
      %38 = vector.broadcast %37 : vector<1x128xf32> to vector<2x128xf32>
      %39 = arith.addf %36, %38 : vector<2x128xf32>
      %cst_30 = arith.constant dense<0xFF800000> : vector<2xf32>
      %40 = vector.multi_reduction <maximumf>, %39, %cst_30 [1] : vector<2x128xf32> to vector<2xf32>
      %41 = vector.shape_cast %40 : vector<2xf32> to vector<2x1xf32>
      %42 = vector.broadcast %41 : vector<2x1xf32> to vector<2x128xf32>
      %43 = arith.subf %39, %42 : vector<2x128xf32>
      %44 = math.exp %43 : vector<2x128xf32>
      %cst_31 = arith.constant dense<0.000000e+00> : vector<2xf32>
      %45 = vector.multi_reduction <add>, %44, %cst_31 [1] : vector<2x128xf32> to vector<2xf32>
      %46 = vector.shape_cast %45 : vector<2xf32> to vector<2x1xf32>
      %47 = math.log %46 : vector<2x1xf32>
      %48 = vector.broadcast %47 : vector<2x1xf32> to vector<2x128xf32>
      %49 = arith.subf %43, %48 : vector<2x128xf32>
      %c0_32 = arith.constant 0 : index
      %c0_33 = arith.constant 0 : index
      %50 = vector.load %arg10[%c0_32, %c0_33] : memref<2x128xf32, #tpu.memory_space<vmem>>, vector<2x128xf32>
      tpu.vector_store %arg10[%c0_32, %c0_33], %49 {strides = array<i32>} : memref<2x128xf32, #tpu.memory_space<vmem>>, vector<2x128xf32>,
    } else {
    }
    return
  }
  func.func @transform_0(%arg0: i32, %arg1: i32) -> (i32, i32, i32) {
    %c0_i32 = arith.constant 0 : i32
    %c0_i32_0 = arith.constant 0 : i32
    return %arg0, %c0_i32, %arg1 : i32, i32, i32
  }
  func.func @transform_1(%arg0: i32, %arg1: i32) -> (i32, i32) {
    %c0_i32 = arith.constant 0 : i32
    %c0_i32_0 = arith.constant 0 : i32
    return %arg0, %c0_i32 : i32, i32
  }
  func.func @transform_2(%arg0: i32, %arg1: i32) -> (i32, i32) {
    %c0_i32 = arith.constant 0 : i32
    %c0_i32_0 = arith.constant 0 : i32
    %c0_i32_1 = arith.constant 0 : i32
    return %c0_i32, %c0_i32_0 : i32, i32
  }
  func.func @transform_3(%arg0: i32, %arg1: i32) -> (i32, i32) {
    %c0_i32 = arith.constant 0 : i32
    %c0_i32_0 = arith.constant 0 : i32
    %c0_i32_1 = arith.constant 0 : i32
    return %c0_i32, %c0_i32_0 : i32, i32
  }
  func.func @transform_4(%arg0: i32, %arg1: i32) -> (i32, i32) {
    %c0_i32 = arith.constant 0 : i32
    %c0_i32_0 = arith.constant 0 : i32
    %c0_i32_1 = arith.constant 0 : i32
    return %c0_i32, %c0_i32_0 : i32, i32
  }
  func.func @transform_5(%arg0: i32, %arg1: i32) -> (i32, i32) {
    %c0_i32 = arith.constant 0 : i32
    %c0_i32_0 = arith.constant 0 : i32
    %c0_i32_1 = arith.constant 0 : i32
    return %c0_i32, %c0_i32_0 : i32, i32
  }
  func.func @transform_6(%arg0: i32, %arg1: i32) -> (i32, i32) {
    %c0_i32 = arith.constant 0 : i32
    %c0_i32_0 = arith.constant 0 : i32
    %c0_i32_1 = arith.constant 0 : i32
    return %c0_i32, %c0_i32_0 : i32, i32
  }
  func.func @transform_7(%arg0: i32, %arg1: i32) -> (i32, i32) {
    %c0_i32 = arith.constant 0 : i32
    %c0_i32_0 = arith.constant 0 : i32
    %c0_i32_1 = arith.constant 0 : i32
    return %c0_i32, %c0_i32_0 : i32, i32
  }
  func.func @transform_8(%arg0: i32, %arg1: i32) -> (i32, i32) {
    %c0_i32 = arith.constant 0 : i32
    %c0_i32_0 = arith.constant 0 : i32
    return %arg0, %c0_i32 : i32, i32
  }
}

</mosaic_0001>

<llo_original>
// kernel: drug_classification_forward.1
$region0: #{drug_classification_forward.1}
  #allocation0 [shape = 'u32[]', space=smem, size = 0x4, offset = 0x4, fixed_abs, tag = 'smem constant byte address 0x4 - core index']
  #allocation1 [shape = 'u32[144,128]{1,0:T(1,128)}', space=vmem, size = 0x12000, scoped, tag = 'internal scratch']
  #allocation2 [shape = 'f32[2,4]{1,0:T(2,128)}', space=vmem, size = 0x400, scoped, tag = 'scratch operand']
  %s0 = inlined_call_operand.vmem [shape: bf16[2,4,256], index: 0, kind: input, shape index: {}]
  %s1 = inlined_call_operand.vmem [shape: bf16[2,256], index: 1, kind: input, shape index: {}]
  %s2 = inlined_call_operand.vmem [shape: bf16[4,256], index: 2, kind: input, shape index: {}]
  %s3 = inlined_call_operand.vmem [shape: f32[1,256], index: 3, kind: input, shape index: {}]
  %s4 = inlined_call_operand.hbm [shape: bf16[256,768], index: 4, kind: input, shape index: {}]
  %s5 = inlined_call_operand.vmem [shape: f32[1,768], index: 5, kind: input, shape index: {}]
  %s6 = inlined_call_operand.hbm [shape: bf16[1024,128], index: 6, kind: input, shape index: {}]
  %s7 = inlined_call_operand.vmem [shape: f32[1,128], index: 7, kind: input, shape index: {}]
  %s8 = inlined_call_operand.hbm [shape: f32[2,128], index: 8, kind: output, shape index: {}]
  %s9 = sld [smem:[#allocation0]]
  $region115: #{drug_classification_forward.1} parent=0
    _
  %s11 = ssub.s32 1, %s9
  %s12 = scalar_select 0, %s11, %s9
  $region1: #{drug_classification_forward.1} parent=0
    #allocation3 [shape = 'u8[4096]{0}', space=vmem, size = 0x1000, scoped, tag = 'input window, operand 0']
    #allocation4 [shape = 'u8[393216]{0}', space=vmem, size = 0x60000, scoped, tag = 'input window, operand 4, single buffered']
    #allocation5 [shape = 's32[2]{0}', space=sflag, size = 0x8, scoped, tag = 'scoped memory for drug_classification_forward.1']
    #allocation6 [shape = 's32[2]{0}', space=sflag, size = 0x8, scoped, tag = 'scoped memory for drug_classification_forward.1']
    #allocation7 [shape = 'u8[262144]{0}', space=vmem, size = 0x40000, scoped, tag = 'input window, operand 6, single buffered']
    #allocation8 [shape = 's32[1]{0}', space=sflag, size = 0x4, scoped, tag = 'scoped memory for drug_classification_forward.1']
    #allocation9 [shape = 'u8[1024]{0}', space=vmem, size = 0x400, scoped, tag = 'output window, operand 0, single buffered']
    %13 = vsyncpa [#allocation5], 0
    %14 = vsyncpa [#allocation8], 0
    %15 = vsyncpa [#allocation6], 0
    loop: start=0, step=1, limit=4
    $region2: #{drug_classification_forward.1} parent=1 // loop_pre_header
      _
    $region3: #{drug_classification_forward.1} parent=1 // loop_header
      %s17 = sphi 0, %s21
      %p18 = scmp.ge.s32.totalorder %s17, 4
      %s24 = sphi 0, %s36
      %s25 = sphi 0, %s32
      %s26 = sphi 0, %s24
      %s27 = sphi 0, %s25
      %s28 = sphi 0, %s26
      %s29 = sphi 0, %s27
      %s41 = sphi 0, %s43
      %s44 = sphi 0, %s41
      %s45 = sphi 0, %s44
      %s61 = sphi 0, %s45
      %s67 = sphi 0, %s69
      %s70 = sphi 0, %s67
      %s71 = sphi 0, %s70
      %s87 = sphi 0, %s71
      %s91 = sphi 0, %s91
      %s93 = sphi 0, %s91
      %s94 = sphi 0, %s93
      %s108 = sphi 0, %s94
      %s112 = sphi 0, %s112
      %s114 = sphi 0, %s112
      %s115 = sphi 0, %s114
      %s129 = sphi 0, %s115
      %s133 = sphi 0, %s133
      %s135 = sphi 0, %s133
      %s136 = sphi 0, %s135
      %s150 = sphi 0, %s136
      %s154 = sphi 0, %s154
      %s156 = sphi 0, %s154
      %s157 = sphi 0, %s156
      %s171 = sphi 0, %s157
      %s175 = sphi 0, %s175
      %s177 = sphi 0, %s175
      %s178 = sphi 0, %s177
      %s192 = sphi 0, %s178
      %s196 = sphi 0, %s196
      %s198 = sphi 0, %s196
      %s199 = sphi 0, %s198
      %s213 = sphi 0, %s199
      %s219 = sphi 0, %s221
      %s222 = sphi 0, %s219
      %s223 = sphi 0, %s222
      %s239 = sphi 0, %s223
    $region4: #{drug_classification_forward.1} parent=1 // loop_header_branch
      %20 = sbr.rel (%p18) target = $region8
    $region5: #{drug_classification_forward.1} parent=1 // loop_body
      %s22 = ssub.s32 %s17, 1
      %s23 = ssub.s32 %s17, 2
      %s30 = sadd.s32 1, %s25
      %p31 = scmp.ge.s32.totalorder %s30, 2
      %s32 = scalar_select %p31, 0, %s30
      %s33 = sadd.s32 1, %s24
      %s34 = scalar_select %p31, %s33, %s24
      %p35 = scmp.ge.s32.totalorder %s34, 1
      %s36 = scalar_select %p35, 0, %s34
      %s37 = ssub.s32 %s24, %s36
      %s38 = ssub.s32 %s25, %s32
      %s39 = sor.u32 %s37, %s38
      %p40 = scmp.eq.s32.totalorder %s39, 0
      %s42 = sadd.s32 %s41, 1
      %s43 = scalar_select %p40, %s41, %s42
      %p46 = pneg %p40
      %p47 = scmp.eq.s32.totalorder %s17, 1
      %p48 = por %p46, %p47
      %p49 = scmp.ne.s32.totalorder %s41, %s44
      %p50 = scmp.eq.s32.totalorder %s17, 0
      %p51 = por %p49, %p50
      %p52 = scmp.ne.s32.totalorder %s41, %s44
      %p53 = scmp.eq.s32.totalorder %s22, 1
      %p54 = por %p52, %p53
      %p55 = scmp.ne.s32.totalorder %s44, %s45
      %p56 = scmp.eq.s32.totalorder %s22, 0
      %p57 = por %p55, %p56
      %p58 = scmp.ne.s32.totalorder %s44, %s45
      %p59 = scmp.eq.s32.totalorder %s23, 1
      %p60 = por %p58, %p59
      %p62 = scmp.ne.s32.totalorder %s45, %s61
      %p63 = scmp.eq.s32.totalorder %s23, 0
      %p64 = por %p62, %p63
      %s65 = ssub.s32 %s24, %s36
      %p66 = scmp.eq.s32.totalorder %s65, 0
      %s68 = sadd.s32 %s67, 1
      %s69 = scalar_select %p66, %s67, %s68
      %p72 = pneg %p66
      %p73 = scmp.eq.s32.totalorder %s17, 1
      %p74 = por %p72, %p73
      %p75 = scmp.ne.s32.totalorder %s67, %s70
      %p76 = scmp.eq.s32.totalorder %s17, 0
      %p77 = por %p75, %p76
      %p78 = scmp.ne.s32.totalorder %s67, %s70
      %p79 = scmp.eq.s32.totalorder %s22, 1
      %p80 = por %p78, %p79
      %p81 = scmp.ne.s32.totalorder %s70, %s71
      %p82 = scmp.eq.s32.totalorder %s22, 0
      %p83 = por %p81, %p82
      %p84 = scmp.ne.s32.totalorder %s70, %s71
      %p85 = scmp.eq.s32.totalorder %s23, 1
      %p86 = por %p84, %p85
      %p88 = scmp.ne.s32.totalorder %s71, %s87
      %p89 = scmp.eq.s32.totalorder %s23, 0
      %p90 = por %p88, %p89
      %s92 = sadd.s32 %s91, 1
      %p95 = scmp.eq.s32.totalorder %s17, 1
      %p96 = scmp.ne.s32.totalorder %s91, %s93
      %p97 = scmp.eq.s32.totalorder %s17, 0
      %p98 = por %p96, %p97
      %p99 = scmp.ne.s32.totalorder %s91, %s93
      %p100 = scmp.eq.s32.totalorder %s22, 1
      %p101 = por %p99, %p100
      %p102 = scmp.ne.s32.totalorder %s93, %s94
      %p103 = scmp.eq.s32.totalorder %s22, 0
      %p104 = por %p102, %p103
      %p105 = scmp.ne.s32.totalorder %s93, %s94
      %p106 = scmp.eq.s32.totalorder %s23, 1
      %p107 = por %p105, %p106
      %p109 = scmp.ne.s32.totalorder %s94, %s108
      %p110 = scmp.eq.s32.totalorder %s23, 0
      %p111 = por %p109, %p110
      %s113 = sadd.s32 %s112, 1
      %p116 = scmp.eq.s32.totalorder %s17, 1
      %p117 = scmp.ne.s32.totalorder %s112, %s114
      %p118 = scmp.eq.s32.totalorder %s17, 0
      %p119 = por %p117, %p118
      %p120 = scmp.ne.s32.totalorder %s112, %s114
      %p121 = scmp.eq.s32.totalorder %s22, 1
      %p122 = por %p120, %p121
      %p123 = scmp.ne.s32.totalorder %s114, %s115
      %p124 = scmp.eq.s32.totalorder %s22, 0
      %p125 = por %p123, %p124
      %p126 = scmp.ne.s32.totalorder %s114, %s115
      %p127 = scmp.eq.s32.totalorder %s23, 1
      %p128 = por %p126, %p127
      %p130 = scmp.ne.s32.totalorder %s115, %s129
      %p131 = scmp.eq.s32.totalorder %s23, 0
      %p132 = por %p130, %p131
      %s134 = sadd.s32 %s133, 1
      %p137 = scmp.eq.s32.totalorder %s17, 1
      %p138 = scmp.ne.s32.totalorder %s133, %s135
      %p139 = scmp.eq.s32.totalorder %s17, 0
      %p140 = por %p138, %p139
      %p141 = scmp.ne.s32.totalorder %s133, %s135
      %p142 = scmp.eq.s32.totalorder %s22, 1
      %p143 = por %p141, %p142
      %p144 = scmp.ne.s32.totalorder %s135, %s136
      %p145 = scmp.eq.s32.totalorder %s22, 0
      %p146 = por %p144, %p145
      %p147 = scmp.ne.s32.totalorder %s135, %s136
      %p148 = scmp.eq.s32.totalorder %s23, 1
      %p149 = por %p147, %p148
      %p151 = scmp.ne.s32.totalorder %s136, %s150
      %p152 = scmp.eq.s32.totalorder %s23, 0
      %p153 = por %p151, %p152
      %s155 = sadd.s32 %s154, 1
      %p158 = scmp.eq.s32.totalorder %s17, 1
      %p159 = scmp.ne.s32.totalorder %s154, %s156
      %p160 = scmp.eq.s32.totalorder %s17, 0
      %p161 = por %p159, %p160
      %p162 = scmp.ne.s32.totalorder %s154, %s156
      %p163 = scmp.eq.s32.totalorder %s22, 1
      %p164 = por %p162, %p163
      %p165 = scmp.ne.s32.totalorder %s156, %s157
      %p166 = scmp.eq.s32.totalorder %s22, 0
      %p167 = por %p165, %p166
      %p168 = scmp.ne.s32.totalorder %s156, %s157
      %p169 = scmp.eq.s32.totalorder %s23, 1
      %p170 = por %p168, %p169
      %p172 = scmp.ne.s32.totalorder %s157, %s171
      %p173 = scmp.eq.s32.totalorder %s23, 0
      %p174 = por %p172, %p173
      %s176 = sadd.s32 %s175, 1
      %p179 = scmp.eq.s32.totalorder %s17, 1
      %p180 = scmp.ne.s32.totalorder %s175, %s177
      %p181 = scmp.eq.s32.totalorder %s17, 0
      %p182 = por %p180, %p181
      %p183 = scmp.ne.s32.totalorder %s175, %s177
      %p184 = scmp.eq.s32.totalorder %s22, 1
      %p185 = por %p183, %p184
      %p186 = scmp.ne.s32.totalorder %s177, %s178
      %p187 = scmp.eq.s32.totalorder %s22, 0
      %p188 = por %p186, %p187
      %p189 = scmp.ne.s32.totalorder %s177, %s178
      %p190 = scmp.eq.s32.totalorder %s23, 1
      %p191 = por %p189, %p190
      %p193 = scmp.ne.s32.totalorder %s178, %s192
      %p194 = scmp.eq.s32.totalorder %s23, 0
      %p195 = por %p193, %p194
      %s197 = sadd.s32 %s196, 1
      %p200 = scmp.eq.s32.totalorder %s17, 1
      %p201 = scmp.ne.s32.totalorder %s196, %s198
      %p202 = scmp.eq.s32.totalorder %s17, 0
      %p203 = por %p201, %p202
      %p204 = scmp.ne.s32.totalorder %s196, %s198
      %p205 = scmp.eq.s32.totalorder %s22, 1
      %p206 = por %p204, %p205
      %p207 = scmp.ne.s32.totalorder %s198, %s199
      %p208 = scmp.eq.s32.totalorder %s22, 0
      %p209 = por %p207, %p208
      %p210 = scmp.ne.s32.totalorder %s198, %s199
      %p211 = scmp.eq.s32.totalorder %s23, 1
      %p212 = por %p210, %p211
      %p214 = scmp.ne.s32.totalorder %s199, %s213
      %p215 = scmp.eq.s32.totalorder %s23, 0
      %p216 = por %p214, %p215
      %s217 = ssub.s32 %s24, %s36
      %p218 = scmp.eq.s32.totalorder %s217, 0
      %s220 = sadd.s32 %s219, 1
      %s221 = scalar_select %p218, %s219, %s220
      %p224 = pneg %p218
      %p225 = scmp.eq.s32.totalorder %s17, 1
      %p226 = por %p224, %p225
      %p227 = scmp.ne.s32.totalorder %s219, %s222
      %p228 = scmp.eq.s32.totalorder %s17, 0
      %p229 = por %p227, %p228
      %p230 = scmp.ne.s32.totalorder %s219, %s222
      %p231 = scmp.eq.s32.totalorder %s22, 1
      %p232 = por %p230, %p231
      %p233 = scmp.ne.s32.totalorder %s222, %s223
      %p234 = scmp.eq.s32.totalorder %s22, 0
      %p235 = por %p233, %p234
      %p236 = scmp.ne.s32.totalorder %s222, %s223
      %p237 = scmp.eq.s32.totalorder %s23, 1
      %p238 = por %p236, %p237
      %p240 = scmp.ne.s32.totalorder %s223, %s239
      %p241 = scmp.eq.s32.totalorder %s23, 0
      %p242 = por %p240, %p241
      %p243 = scmp.le.s32.totalorder 1, %s17
      %p244 = scmp.lt.s32.totalorder %s17, 3
      %p245 = pnand %p243, %p244
      %p246 = pneg %p245
      // Predicated region
      $region9: #{drug_classification_forward.1} parent=5 // pred_check
        _
      $region10: #{drug_classification_forward.1} parent=5 // pred_check_branch
        %248 = sbr.rel (%p245) target = $region12
      $region11: #{drug_classification_forward.1} parent=5 // pred_region
        %s249 = ssub.s32 %s17, 1
        // Predicated region
        $region13: #{drug_classification_forward.1} parent=11 // pred_check
          %p250 = pneg %p83
        $region14: #{drug_classification_forward.1} parent=11 // pred_check_branch
          %252 = sbr.rel (%p250) target = $region16
        $region15: #{drug_classification_forward.1} parent=11 // pred_region
          %p253 = scmp.lt.s32.totalorder %s26, 0
          %s254 = scalar_select %p253, %s26, 0
          %s255 = smul.addr %s254, 2
          %s256 = scalar_lea.vmem %s1, %s255
        $region16: #{drug_classification_forward.1} parent=11 // pred_fallthru
          _
        // Predicated region
        $region17: #{drug_classification_forward.1} parent=11 // pred_check
          %p257 = pneg %p104
        $region18: #{drug_classification_forward.1} parent=11 // pred_check_branch
          %259 = sbr.rel (%p257) target = $region20
        $region19: #{drug_classification_forward.1} parent=11 // pred_region
          _
        $region20: #{drug_classification_forward.1} parent=11 // pred_fallthru
          _
        // Predicated region
        $region21: #{drug_classification_forward.1} parent=11 // pred_check
          %p260 = pneg %p125
        $region22: #{drug_classification_forward.1} parent=11 // pred_check_branch
          %262 = sbr.rel (%p260) target = $region24
        $region23: #{drug_classification_forward.1} parent=11 // pred_region
          _
        $region24: #{drug_classification_forward.1} parent=11 // pred_fallthru
          _
        // Predicated region
        $region25: #{drug_classification_forward.1} parent=11 // pred_check
          %p263 = pneg %p146
        $region26: #{drug_classification_forward.1} parent=11 // pred_check_branch
          %265 = sbr.rel (%p263) target = $region28
        $region27: #{drug_classification_forward.1} parent=11 // pred_region
          %s267 = ssub.s32 12288, 12288
          %268 = vsyncadd [#allocation5], %s267
          %s269 = sshll.u32 [#allocation4], 4
          %s270 = int_to_ptr.vmem [resolvable:$true] %s269
          %275 = dma.hbm_to_vmem [thread:$0]  %s4, 12288, %s270, [#allocation5], 384, 384, 24
        $region28: #{drug_classification_forward.1} parent=11 // pred_fallthru
          _
        // Predicated region
        $region29: #{drug_classification_forward.1} parent=11 // pred_check
          %p276 = pneg %p167
        $region30: #{drug_classification_forward.1} parent=11 // pred_check_branch
          %278 = sbr.rel (%p276) target = $region32
        $region31: #{drug_classification_forward.1} parent=11 // pred_region
          _
        $region32: #{drug_classification_forward.1} parent=11 // pred_fallthru
          _
        // Predicated region
        $region33: #{drug_classification_forward.1} parent=11 // pred_check
          %p279 = pneg %p188
        $region34: #{drug_classification_forward.1} parent=11 // pred_check_branch
          %281 = sbr.rel (%p279) target = $region36
        $region35: #{drug_classification_forward.1} parent=11 // pred_region
          %s283 = ssub.s32 8192, 8192
          %284 = vsyncadd [#allocation8], %s283
          %s285 = sshll.u32 [#allocation7], 4
          %s286 = int_to_ptr.vmem [resolvable:$true] %s285
          %291 = dma.hbm_to_vmem [thread:$0]  %s6, 8192, %s286, [#allocation8], 64, 64, 4
        $region36: #{drug_classification_forward.1} parent=11 // pred_fallthru
          _
        // Predicated region
        $region37: #{drug_classification_forward.1} parent=11 // pred_check
          %p292 = pneg %p209
        $region38: #{drug_classification_forward.1} parent=11 // pred_check_branch
          %294 = sbr.rel (%p292) target = $region40
        $region39: #{drug_classification_forward.1} parent=11 // pred_region
          _
        $region40: #{drug_classification_forward.1} parent=11 // pred_fallthru
          _
      $region12: #{drug_classification_forward.1} parent=5 // pred_fallthru
        _
      %p295 = scmp.lt.s32.totalorder %s17, 2
      // Predicated region
      $region41: #{drug_classification_forward.1} parent=5 // pred_check
        %p296 = pneg %p295
      $region42: #{drug_classification_forward.1} parent=5 // pred_check_branch
        %298 = sbr.rel (%p296) target = $region44
      $region43: #{drug_classification_forward.1} parent=5 // pred_region
        // Predicated region
        $region45: #{drug_classification_forward.1} parent=43 // pred_check
          %p299 = pneg %p51
        $region46: #{drug_classification_forward.1} parent=43 // pred_check_branch
          %301 = sbr.rel (%p299) target = $region48
        $region47: #{drug_classification_forward.1} parent=43 // pred_region
          %s302 = sand.u32 %s41, 1
          %s303 = sand.u32 %s41, 1
          %s304 = smul.addr %s303, 4
          %s305 = scalar_lea.vmem [#allocation3], %s304
          %s306 = smul.u32 2, %s24
          %s307 = smul.addr %s306, 2
          %s308 = sadd.s32 %s25, %s307
          %s309 = smul.addr %s308, 2
          %s310 = scalar_lea.vmem %s0, %s309
          // Predicated region
          $region49: #{drug_classification_forward.1} parent=47 // pred_check
            _
          $region50: #{drug_classification_forward.1} parent=47 // pred_check_branch
            %312 = sbr.rel (0) target = $region52
          $region51: #{drug_classification_forward.1} parent=47 // pred_region
            // Predicated region
            $region53: #{drug_classification_forward.1} parent=51 // pred_check
              _
            $region54: #{drug_classification_forward.1} parent=51 // pred_check_branch
              %314 = sbr.rel target = $region56
            $region55: #{drug_classification_forward.1} parent=51 // pred_region
              // Predicated region
              $region68: #{drug_classification_forward.1} parent=55 // pred_check
                _
              $region69: #{drug_classification_forward.1} parent=55 // pred_check_branch
                %331 = sbr.rel (0) target = $region71
              $region70: #{drug_classification_forward.1} parent=55 // pred_region
                loop: start=0, step=1, limit=1
                $region72: #{drug_classification_forward.1} parent=70 // loop_pre_header
                  _
                $region73: #{drug_classification_forward.1} parent=70 // loop_header
                  %s334 = sphi 0, %s338
                  %p335 = scmp.ge.s32.totalorder %s334, 1
                  %s339 = sphi %s310, %s310
                  %s340 = sphi %s305, %s305
                $region74: #{drug_classification_forward.1} parent=70 // loop_header_branch
                  %337 = sbr.rel (%p335) target = $region78
                $region75: #{drug_classification_forward.1} parent=70 // loop_body
                  %v341 = vld [vmem:[%s339] sm:$0x3]
                  %342 = vst [vmem:[%s340] sm:$0x3] %v341
                  %v343 = vld [vmem:[%s339 + $0x4] sm:$0x3]
                  %344 = vst [vmem:[%s340 + $0x2] sm:$0x3] %v343
                $region76: #{drug_classification_forward.1} parent=70 // loop_footer
                  %s338 = sadd.s32 1, %s334
                $region77: #{drug_classification_forward.1} parent=70 // loop_footer_branch
                  %333 = sbr.rel target = $region73
                $region78: #{drug_classification_forward.1} parent=70 // loop_exit
                  _
              $region71: #{drug_classification_forward.1} parent=55 // pred_fallthru
                _
            $region56: #{drug_classification_forward.1} parent=51 // pred_fallthru
              _
            // Predicated region
            $region57: #{drug_classification_forward.1} parent=51 // pred_check
              _
            $region58: #{drug_classification_forward.1} parent=51 // pred_check_branch
              %316 = sbr.rel (0) target = $region60
            $region59: #{drug_classification_forward.1} parent=51 // pred_region
              loop: start=0, step=1, limit=1
              $region61: #{drug_classification_forward.1} parent=59 // loop_pre_header
                _
              $region62: #{drug_classification_forward.1} parent=59 // loop_header
                %s319 = sphi 0, %s323
                %p320 = scmp.ge.s32.totalorder %s319, 1
                %s324 = sphi %s310, %s310
                %s325 = sphi %s305, %s305
              $region63: #{drug_classification_forward.1} parent=59 // loop_header_branch
                %322 = sbr.rel (%p320) target = $region67
              $region64: #{drug_classification_forward.1} parent=59 // loop_body
                %v326 = vld [vmem:[%s324] sm:$0x3]
                %327 = vst [vmem:[%s325] sm:$0x3] %v326
                %v328 = vld [vmem:[%s324 + $0x4] sm:$0x3]
                %329 = vst [vmem:[%s325 + $0x2] sm:$0x3] %v328
              $region65: #{drug_classification_forward.1} parent=59 // loop_footer
                %s323 = sadd.s32 1, %s319
              $region66: #{drug_classification_forward.1} parent=59 // loop_footer_branch
                %318 = sbr.rel target = $region62
              $region67: #{drug_classification_forward.1} parent=59 // loop_exit
                _
            $region60: #{drug_classification_forward.1} parent=51 // pred_fallthru
              _
          $region52: #{drug_classification_forward.1} parent=47 // pred_fallthru
            _
          %345 = vnop
        $region48: #{drug_classification_forward.1} parent=43 // pred_fallthru
          _
      $region44: #{drug_classification_forward.1} parent=5 // pred_fallthru
        _
      %p346 = scmp.le.s32.totalorder 1, %s17
      %p347 = scmp.lt.s32.totalorder %s17, 3
      %p348 = pnand %p346, %p347
      %p349 = pneg %p348
      // Predicated region
      $region79: #{drug_classification_forward.1} parent=5 // pred_check
        _
      $region80: #{drug_classification_forward.1} parent=5 // pred_check_branch
        %351 = sbr.rel (%p348) target = $region82
      $region81: #{drug_classification_forward.1} parent=5 // pred_region
        %s352 = ssub.s32 %s17, 1
        %s353 = sand.u32 %s44, 1
        %s354 = sand.u32 %s44, 1
        %s355 = smul.addr %s354, 4
        %s356 = scalar_lea.vmem [#allocation3], %s355
        // Predicated region
        $region83: #{drug_classification_forward.1} parent=81 // pred_check
          %p357 = pneg %p57
        $region84: #{drug_classification_forward.1} parent=81 // pred_check_branch
          %359 = sbr.rel (%p357) target = $region86
        $region85: #{drug_classification_forward.1} parent=81 // pred_region
          _
        $region86: #{drug_classification_forward.1} parent=81 // pred_fallthru
          _
        // Predicated region
        $region87: #{drug_classification_forward.1} parent=81 // pred_check
          %p360 = pneg %p146
        $region88: #{drug_classification_forward.1} parent=81 // pred_check_branch
          %362 = sbr.rel (%p360) target = $region90
        $region89: #{drug_classification_forward.1} parent=81 // pred_region
          %363 = dma.done [#allocation5], 12288
        $region90: #{drug_classification_forward.1} parent=81 // pred_fallthru
          _
        // Predicated region
        $region91: #{drug_classification_forward.1} parent=81 // pred_check
          %p364 = pneg %p188
        $region92: #{drug_classification_forward.1} parent=81 // pred_check_branch
          %366 = sbr.rel (%p364) target = $region94
        $region93: #{drug_classification_forward.1} parent=81 // pred_region
          %367 = dma.done [#allocation8], 8192
        $region94: #{drug_classification_forward.1} parent=81 // pred_fallthru
          _
        %s368 = sand.u32 %s44, 1
        %s369 = sand.u32 %s44, 1
        %s370 = smul.addr %s369, 4
        %s371 = scalar_lea.vmem [#allocation3], %s370
        %p372 = pneg %p57
        %p373 = pneg %p54
        %p374 = scmp.lt.s32.totalorder %s26, 0
        %s375 = scalar_select %p374, %s26, 0
        %s376 = smul.addr %s375, 2
        %s377 = scalar_lea.vmem %s1, %s376
        %p378 = pneg %p83
        %p379 = pneg %p80
        %p380 = pneg %p104
        %p381 = pneg %p101
        %p382 = pneg %p125
        %p383 = pneg %p122
        %p384 = pneg %p146
        %p385 = pneg %p143
        %p386 = pneg %p167
        %p387 = pneg %p164
        %p388 = pneg %p188
        %p389 = pneg %p185
        %p390 = pneg %p209
        %p391 = pneg %p206
        %p392 = pneg %p235
        %p393 = pneg %p232
        %s394 = smul.u32 2, %s26
        %p395 = scmp.lt.s32.totalorder %s26, 0
        %s396 = scalar_select %p395, %s26, 0
        %s397 = smul.addr %s396, 2
        %s398 = scalar_lea.vmem %s1, %s397
        %p400 = scmp.eq.s32.totalorder %s27, 0
        // Predicated region
        $region95: #{drug_classification_forward.1} parent=81 // pred_check
          %p401 = pneg %p400
        $region96: #{drug_classification_forward.1} parent=81 // pred_check_branch
          %403 = sbr.rel (%p401) target = $region98
        $region97: #{drug_classification_forward.1} parent=81 // pred_region
          %vm404 = vcmask 25600
          %405 = vst.msk [vmem:[#allocation2] sm:$0x3] %vm404, 0.0
        $region98: #{drug_classification_forward.1} parent=81 // pred_fallthru
          _
        %v406 = vld [vmem:[#allocation2] sm:$0x3]
        %v407 = vld [vmem:[%s356] sm:$0x3]
        %v408 = vld [vmem:[%s356 + $0x2] sm:$0x3]
        %v409 = vunpack.c.l.bf16 %v407
        %v410 = vunpack.c.l.bf16 %v408
        %vm411 = vcmask 1043456
        %v412 = vsel %vm411, %v409, 0.0
        %413 = vadd.xlane.f32.xlu0 %v412
        %v414 = vpop.xlane.xlu0 %413
        %v415 = vsel %vm411, %v410, 0.0
        %416 = vadd.xlane.f32.xlu0 %v415
        %v417 = vpop.xlane.xlu0 %416
        %v420 = vlaneseq
        %v421 = vand.u32 %v420, 127
        %v422 = vlaneseq
        %v423 = vshrl.u32 %v422, 7
        %v424 = vsub.s32 %v421, %v423
        %v425 = vrot.slane %v414, %v424
        %v426 = vlaneseq
        %v427 = vshrl.u32 %v426, 7
        %v428 = vsub.s32 %v421, %v427
        %v429 = vrot.slane %v417, %v428
        %vm430 = vcmask 1041409
        %v431 = vsel %vm430, %v429, %v425
        %v433 = vadd.f32 %v406, %v431
        %vm434 = vcmask 25600
        %435 = vst.msk [vmem:[#allocation2] sm:$0x3] %vm434, %v433
        %p436 = scmp.eq.s32.totalorder %s27, 1
        // Predicated region
        $region99: #{drug_classification_forward.1} parent=81 // pred_check
          %p437 = pneg %p436
        $region100: #{drug_classification_forward.1} parent=81 // pred_check_branch
          %439 = sbr.rel (%p437) target = $region102
        $region101: #{drug_classification_forward.1} parent=81 // pred_region
          %v440 = vld [vmem:[#allocation2] sm:$0x3]
          %v441 = vmul.f32 %v440, 0.00390625
          %v442 = vpack.c.bf16 %v441, %v441
          %v443 = vld [vmem:[%s2] sm:$0xf]
          %v444 = vld [vmem:[%s3] sm:$0x3]
          %v446 = vlaneseq
          %v447 = vshrl.u32 %v446, 7
          %v448 = vsub.s32 0, %v447
          %v449 = vrot.slane %v444, %v448
          %v450 = vlaneseq
          %v451 = vshrl.u32 %v450, 7
          %v452 = vsub.s32 1, %v451
          %v453 = vrot.slane %v444, %v452
          %v458 = vunpack.c.l.s4 1983009808
          %v459 = vunpack.c.0.s8 %v458
          %v460 = vlaneseq
          %v461 = vshrl.u32 %v460, 7
          %v462 = vsub.s32 %v459, %v461
          %v463 = vrot.slane %v443, %v462
          %v464 = vcombine.high %v463, %v463
          %vm465 = vcmask 31744
          %v467 = vsel %vm465, %v442, 0
          %vm469 = vcmask 1041408
          %v471 = vsel %vm469, %v463, 0
          %v474 = vsel %vm469, %v464, 0
          %476 = vmatprep.subr.bf16.mxu0 %v474
          %477 = vmatpush1.bf16.msra.mxu0 %v471
          %478 = vmatprep.subr.bf16.mxu0 0
          %479 = vmatpush1.bf16.msra.mxu0 0
          %480 = vmatprep.subr.bf16.mxu0 0
          %481 = vmatpush1.bf16.msra.mxu0 0
          %482 = vmatprep.subr.bf16.mxu0 0
          %483 = vmatpush1.bf16.msra.mxu0 0
          %484 = vmatprep.subr.bf16.mxu0 0
          %485 = vmatpush1.bf16.msra.mxu0 0
          %486 = vmatprep.subr.bf16.mxu0 0
          %487 = vmatpush1.bf16.msra.mxu0 0
          %488 = vmatprep.subr.bf16.mxu0 0
          %489 = vmatpush1.bf16.msra.mxu0 0
          %490 = vmatprep.subr.bf16.mxu0 0
          %491 = vmatpush1.bf16.msra.mxu0 0
          %492 = vmatprep.subr.bf16.mxu0 0
          %493 = vmatpush1.bf16.msra.mxu0 0
          %494 = vmatprep.subr.bf16.mxu0 0
          %495 = vmatpush1.bf16.msra.mxu0 0
          %496 = vmatprep.subr.bf16.mxu0 0
          %497 = vmatpush1.bf16.msra.mxu0 0
          %498 = vmatprep.subr.bf16.mxu0 0
          %499 = vmatpush1.bf16.msra.mxu0 0
          %500 = vmatprep.subr.bf16.mxu0 0
          %501 = vmatpush1.bf16.msra.mxu0 0
          %502 = vmatprep.subr.bf16.mxu0 0
          %503 = vmatpush1.bf16.msra.mxu0 0
          %504 = vmatprep.subr.bf16.mxu0 0
          %505 = vmatpush1.bf16.msra.mxu0 0
          %506 = vmatprep.subr.bf16.mxu0 0
          %507 = vmatpush1.bf16.msra.mxu0 0
          %508 = vmatprep.mubr.bf16.mxu0 0
          %509 = vmatmul.mubr.bf16.gmra.mrb[0].mxu0 %v467
          %v510 = vpop.f32.mrb[0].mxu0
          %v511 = vadd.f32 %v449, %v510
          %v512 = vpop.f32.mrb[0].mxu0
          %v513 = vadd.f32 %v453, %v512
          %v514 = vpop.f32.mrb[0].mxu0
          %v515 = vpop.f32.mrb[0].mxu0
          %516 = vdwg.mxu0
          %v517 = vmax.f32 %v511, 0.0
          %v518 = vmax.f32 %v513, 0.0
          %v519 = vld [vmem:[%s398] sm:$0x3]
          %v520 = vld [vmem:[#allocation4] sm:$0xff]
          %v521 = vld [vmem:[#allocation4 + $0x8] sm:$0xff]
          %v522 = vld [vmem:[#allocation4 + $0x10] sm:$0xff]
          %v523 = vld [vmem:[#allocation4 + $0x18] sm:$0xff]
          %v524 = vld [vmem:[#allocation4 + $0x20] sm:$0xff]
          %v525 = vld [vmem:[#allocation4 + $0x28] sm:$0xff]
          %v526 = vld [vmem:[#allocation4 + $0x30] sm:$0xff]
          %v527 = vld [vmem:[#allocation4 + $0x38] sm:$0xff]
          %v528 = vld [vmem:[#allocation4 + $0x40] sm:$0xff]
          %v529 = vld [vmem:[#allocation4 + $0x48] sm:$0xff]
          %v530 = vld [vmem:[#allocation4 + $0x50] sm:$0xff]
          %v531 = vld [vmem:[#allocation4 + $0x58] sm:$0xff]
          %v532 = vld [vmem:[#allocation4 + $0x60] sm:$0xff]
          %v533 = vld [vmem:[#allocation4 + $0x68] sm:$0xff]
          %v534 = vld [vmem:[#allocation4 + $0x70] sm:$0xff]
          %v535 = vld [vmem:[#allocation4 + $0x78] sm:$0xff]
          %v536 = vld [vmem:[#allocation4 + $0x80] sm:$0xff]
          %v537 = vld [vmem:[#allocation4 + $0x88] sm:$0xff]
          %v538 = vld [vmem:[#allocation4 + $0x90] sm:$0xff]
          %v539 = vld [vmem:[#allocation4 + $0x98] sm:$0xff]
          %v540 = vld [vmem:[#allocation4 + $0xa0] sm:$0xff]
          %v541 = vld [vmem:[#allocation4 + $0xa8] sm:$0xff]
          %v542 = vld [vmem:[#allocation4 + $0xb0] sm:$0xff]
          %v543 = vld [vmem:[#allocation4 + $0xb8] sm:$0xff]
          %v544 = vld [vmem:[#allocation4 + $0xc0] sm:$0xff]
          %v545 = vld [vmem:[#allocation4 + $0xc8] sm:$0xff]
          %v546 = vld [vmem:[#allocation4 + $0xd0] sm:$0xff]
          %v547 = vld [vmem:[#allocation4 + $0xd8] sm:$0xff]
          %v548 = vld [vmem:[#allocation4 + $0xe0] sm:$0xff]
          %v549 = vld [vmem:[#allocation4 + $0xe8] sm:$0xff]
          %v550 = vld [vmem:[#allocation4 + $0xf0] sm:$0xff]
          %v551 = vld [vmem:[#allocation4 + $0xf8] sm:$0xff]
          %v552 = vld [vmem:[#allocation4 + $0x100] sm:$0xff]
          %v553 = vld [vmem:[#allocation4 + $0x108] sm:$0xff]
          %v554 = vld [vmem:[#allocation4 + $0x110] sm:$0xff]
          %v555 = vld [vmem:[#allocation4 + $0x118] sm:$0xff]
          %v556 = vld [vmem:[#allocation4 + $0x120] sm:$0xff]
          %v557 = vld [vmem:[#allocation4 + $0x128] sm:$0xff]
          %v558 = vld [vmem:[#allocation4 + $0x130] sm:$0xff]
          %v559 = vld [vmem:[#allocation4 + $0x138] sm:$0xff]
          %v560 = vld [vmem:[#allocation4 + $0x140] sm:$0xff]
          %v561 = vld [vmem:[#allocation4 + $0x148] sm:$0xff]
          %v562 = vld [vmem:[#allocation4 + $0x150] sm:$0xff]
          %v563 = vld [vmem:[#allocation4 + $0x158] sm:$0xff]
          %v564 = vld [vmem:[#allocation4 + $0x160] sm:$0xff]
          %v565 = vld [vmem:[#allocation4 + $0x168] sm:$0xff]
          %v566 = vld [vmem:[#allocation4 + $0x170] sm:$0xff]
          %v567 = vld [vmem:[#allocation4 + $0x178] sm:$0xff]
          %v568 = vld [vmem:[#allocation4 + $0x180] sm:$0xff]
          %v569 = vld [vmem:[#allocation4 + $0x188] sm:$0xff]
          %v570 = vld [vmem:[#allocation4 + $0x190] sm:$0xff]
          %v571 = vld [vmem:[#allocation4 + $0x198] sm:$0xff]
          %v572 = vld [vmem:[#allocation4 + $0x1a0] sm:$0xff]
          %v573 = vld [vmem:[#allocation4 + $0x1a8] sm:$0xff]
          %v574 = vld [vmem:[#allocation4 + $0x1b0] sm:$0xff]
          %v575 = vld [vmem:[#allocation4 + $0x1b8] sm:$0xff]
          %v576 = vld [vmem:[#allocation4 + $0x1c0] sm:$0xff]
          %v577 = vld [vmem:[#allocation4 + $0x1c8] sm:$0xff]
          %v578 = vld [vmem:[#allocation4 + $0x1d0] sm:$0xff]
          %v579 = vld [vmem:[#allocation4 + $0x1d8] sm:$0xff]
          %v580 = vld [vmem:[#allocation4 + $0x1e0] sm:$0xff]
          %v581 = vld [vmem:[#allocation4 + $0x1e8] sm:$0xff]
          %v582 = vld [vmem:[#allocation4 + $0x1f0] sm:$0xff]
          %v583 = vld [vmem:[#allocation4 + $0x1f8] sm:$0xff]
          %v584 = vld [vmem:[#allocation4 + $0x200] sm:$0xff]
          %v585 = vld [vmem:[#allocation4 + $0x208] sm:$0xff]
          %v586 = vld [vmem:[#allocation4 + $0x210] sm:$0xff]
          %v587 = vld [vmem:[#allocation4 + $0x218] sm:$0xff]
          %v588 = vld [vmem:[#allocation4 + $0x220] sm:$0xff]
          %v589 = vld [vmem:[#allocation4 + $0x228] sm:$0xff]
          %v590 = vld [vmem:[#allocation4 + $0x230] sm:$0xff]
          %v591 = vld [vmem:[#allocation4 + $0x238] sm:$0xff]
          %v592 = vld [vmem:[#allocation4 + $0x240] sm:$0xff]
          %v593 = vld [vmem:[#allocation4 + $0x248] sm:$0xff]
          %v594 = vld [vmem:[#allocation4 + $0x250] sm:$0xff]
          %v595 = vld [vmem:[#allocation4 + $0x258] sm:$0xff]
          %v596 = vld [vmem:[#allocation4 + $0x260] sm:$0xff]
          %v597 = vld [vmem:[#allocation4 + $0x268] sm:$0xff]
          %v598 = vld [vmem:[#allocation4 + $0x270] sm:$0xff]
          %v599 = vld [vmem:[#allocation4 + $0x278] sm:$0xff]
          %v600 = vld [vmem:[#allocation4 + $0x280] sm:$0xff]
          %v601 = vld [vmem:[#allocation4 + $0x288] sm:$0xff]
          %v602 = vld [vmem:[#allocation4 + $0x290] sm:$0xff]
          %v603 = vld [vmem:[#allocation4 + $0x298] sm:$0xff]
          %v604 = vld [vmem:[#allocation4 + $0x2a0] sm:$0xff]
          %v605 = vld [vmem:[#allocation4 + $0x2a8] sm:$0xff]
          %v606 = vld [vmem:[#allocation4 + $0x2b0] sm:$0xff]
          %v607 = vld [vmem:[#allocation4 + $0x2b8] sm:$0xff]
          %v608 = vld [vmem:[#allocation4 + $0x2c0] sm:$0xff]
          %v609 = vld [vmem:[#allocation4 + $0x2c8] sm:$0xff]
          %v610 = vld [vmem:[#allocation4 + $0x2d0] sm:$0xff]
          %v611 = vld [vmem:[#allocation4 + $0x2d8] sm:$0xff]
          %v612 = vld [vmem:[#allocation4 + $0x2e0] sm:$0xff]
          %v613 = vld [vmem:[#allocation4 + $0x2e8] sm:$0xff]
          %v614 = vld [vmem:[#allocation4 + $0x2f0] sm:$0xff]
          %v615 = vld [vmem:[#allocation4 + $0x2f8] sm:$0xff]
          %v616 = vld [vmem:[%s5] sm:$0x3f]
          %v618 = vlaneseq
          %v619 = vshrl.u32 %v618, 7
          %v620 = vsub.s32 0, %v619
          %v621 = vrot.slane %v616, %v620
          %v622 = vlaneseq
          %v623 = vshrl.u32 %v622, 7
          %v624 = vsub.s32 1, %v623
          %v625 = vrot.slane %v616, %v624
          %v626 = vlaneseq
          %v627 = vshrl.u32 %v626, 7
          %v628 = vsub.s32 2, %v627
          %v629 = vrot.slane %v616, %v628
          %v630 = vlaneseq
          %v631 = vshrl.u32 %v630, 7
          %v632 = vsub.s32 3, %v631
          %v633 = vrot.slane %v616, %v632
          %v634 = vlaneseq
          %v635 = vshrl.u32 %v634, 7
          %v636 = vsub.s32 4, %v635
          %v637 = vrot.slane %v616, %v636
          %v638 = vlaneseq
          %v639 = vshrl.u32 %v638, 7
          %v640 = vsub.s32 5, %v639
          %v641 = vrot.slane %v616, %v640
          %v650 = vunpack.c.l.s4 1966171168
          %v651 = vunpack.c.0.s8 %v650
          %v652 = vlaneseq
          %v653 = vshrl.u32 %v652, 7
          %v654 = vsub.s32 %v651, %v653
          %v655 = vrot.slane %v519, %v654
          %v656 = vcombine.high %v655, %v655
          %v658 = vunpack.c.l.s4 1966171168
          %v659 = vunpack.c.0.s8 %v658
          %v660 = vlaneseq
          %v661 = vshrl.u32 %v660, 7
          %v662 = vsub.s32 %v659, %v661
          %v663 = vrot.slane %v655, %v662
          %v665 = vunpack.c.l.s4 1966171168
          %v666 = vunpack.c.0.s8 %v665
          %v667 = vlaneseq
          %v668 = vshrl.u32 %v667, 7
          %v669 = vsub.s32 %v666, %v668
          %v670 = vrot.slane %v656, %v669
          %v769 = vunpack.c.l.b16 %v520
          %v770 = vunpack.c.h.b16 %v520
          %v771 = vunpack.c.l.b16 %v521
          %v772 = vunpack.c.h.b16 %v521
          %v773 = vunpack.c.l.b16 %v522
          %v774 = vunpack.c.h.b16 %v522
          %v775 = vunpack.c.l.b16 %v523
          %v776 = vunpack.c.h.b16 %v523
          %v777 = vunpack.c.l.b16 %v524
          %v778 = vunpack.c.h.b16 %v524
          %v779 = vunpack.c.l.b16 %v525
          %v780 = vunpack.c.h.b16 %v525
          %v781 = vunpack.c.l.b16 %v526
          %v782 = vunpack.c.h.b16 %v526
          %v783 = vunpack.c.l.b16 %v527
          %v784 = vunpack.c.h.b16 %v527
          %v785 = vunpack.c.l.b16 %v528
          %v786 = vunpack.c.h.b16 %v528
          %v787 = vunpack.c.l.b16 %v529
          %v788 = vunpack.c.h.b16 %v529
          %v789 = vunpack.c.l.b16 %v530
          %v790 = vunpack.c.h.b16 %v530
          %v791 = vunpack.c.l.b16 %v531
          %v792 = vunpack.c.h.b16 %v531
          %v793 = vunpack.c.l.b16 %v532
          %v794 = vunpack.c.h.b16 %v532
          %v795 = vunpack.c.l.b16 %v533
          %v796 = vunpack.c.h.b16 %v533
          %v797 = vunpack.c.l.b16 %v534
          %v798 = vunpack.c.h.b16 %v534
          %v799 = vunpack.c.l.b16 %v535
          %v800 = vunpack.c.h.b16 %v535
          %v801 = vunpack.c.l.b16 %v536
          %v802 = vunpack.c.h.b16 %v536
          %v803 = vunpack.c.l.b16 %v537
          %v804 = vunpack.c.h.b16 %v537
          %v805 = vunpack.c.l.b16 %v538
          %v806 = vunpack.c.h.b16 %v538
          %v807 = vunpack.c.l.b16 %v539
          %v808 = vunpack.c.h.b16 %v539
          %v809 = vunpack.c.l.b16 %v540
          %v810 = vunpack.c.h.b16 %v540
          %v811 = vunpack.c.l.b16 %v541
          %v812 = vunpack.c.h.b16 %v541
          %v813 = vunpack.c.l.b16 %v542
          %v814 = vunpack.c.h.b16 %v542
          %v815 = vunpack.c.l.b16 %v543
          %v816 = vunpack.c.h.b16 %v543
          %v817 = vunpack.c.l.b16 %v544
          %v818 = vunpack.c.h.b16 %v544
          %v819 = vunpack.c.l.b16 %v545
          %v820 = vunpack.c.h.b16 %v545
          %v821 = vunpack.c.l.b16 %v546
          %v822 = vunpack.c.h.b16 %v546
          %v823 = vunpack.c.l.b16 %v547
          %v824 = vunpack.c.h.b16 %v547
          %v825 = vunpack.c.l.b16 %v548
          %v826 = vunpack.c.h.b16 %v548
          %v827 = vunpack.c.l.b16 %v549
          %v828 = vunpack.c.h.b16 %v549
          %v829 = vunpack.c.l.b16 %v550
          %v830 = vunpack.c.h.b16 %v550
          %v831 = vunpack.c.l.b16 %v551
          %v832 = vunpack.c.h.b16 %v551
          %v833 = vunpack.c.l.b16 %v552
          %v834 = vunpack.c.h.b16 %v552
          %v835 = vunpack.c.l.b16 %v553
          %v836 = vunpack.c.h.b16 %v553
          %v837 = vunpack.c.l.b16 %v554
          %v838 = vunpack.c.h.b16 %v554
          %v839 = vunpack.c.l.b16 %v555
          %v840 = vunpack.c.h.b16 %v555
          %v841 = vunpack.c.l.b16 %v556
          %v842 = vunpack.c.h.b16 %v556
          %v843 = vunpack.c.l.b16 %v557
          %v844 = vunpack.c.h.b16 %v557
          %v845 = vunpack.c.l.b16 %v558
          %v846 = vunpack.c.h.b16 %v558
          %v847 = vunpack.c.l.b16 %v559
          %v848 = vunpack.c.h.b16 %v559
          %v849 = vunpack.c.l.b16 %v560
          %v850 = vunpack.c.h.b16 %v560
          %v851 = vunpack.c.l.b16 %v561
          %v852 = vunpack.c.h.b16 %v561
          %v853 = vunpack.c.l.b16 %v562
          %v854 = vunpack.c.h.b16 %v562
          %v855 = vunpack.c.l.b16 %v563
          %v856 = vunpack.c.h.b16 %v563
          %v857 = vunpack.c.l.b16 %v564
          %v858 = vunpack.c.h.b16 %v564
          %v859 = vunpack.c.l.b16 %v565
          %v860 = vunpack.c.h.b16 %v565
          %v861 = vunpack.c.l.b16 %v566
          %v862 = vunpack.c.h.b16 %v566
          %v863 = vunpack.c.l.b16 %v567
          %v864 = vunpack.c.h.b16 %v567
          %v865 = vunpack.c.l.b16 %v568
          %v866 = vunpack.c.h.b16 %v568
          %v867 = vunpack.c.l.b16 %v569
          %v868 = vunpack.c.h.b16 %v569
          %v869 = vunpack.c.l.b16 %v570
          %v870 = vunpack.c.h.b16 %v570
          %v871 = vunpack.c.l.b16 %v571
          %v872 = vunpack.c.h.b16 %v571
          %v873 = vunpack.c.l.b16 %v572
          %v874 = vunpack.c.h.b16 %v572
          %v875 = vunpack.c.l.b16 %v573
          %v876 = vunpack.c.h.b16 %v573
          %v877 = vunpack.c.l.b16 %v574
          %v878 = vunpack.c.h.b16 %v574
          %v879 = vunpack.c.l.b16 %v575
          %v880 = vunpack.c.h.b16 %v575
          %v881 = vunpack.c.l.b16 %v576
          %v882 = vunpack.c.h.b16 %v576
          %v883 = vunpack.c.l.b16 %v577
          %v884 = vunpack.c.h.b16 %v577
          %v885 = vunpack.c.l.b16 %v578
          %v886 = vunpack.c.h.b16 %v578
          %v887 = vunpack.c.l.b16 %v579
          %v888 = vunpack.c.h.b16 %v579
          %v889 = vunpack.c.l.b16 %v580
          %v890 = vunpack.c.h.b16 %v580
          %v891 = vunpack.c.l.b16 %v581
          %v892 = vunpack.c.h.b16 %v581
          %v893 = vunpack.c.l.b16 %v582
          %v894 = vunpack.c.h.b16 %v582
          %v895 = vunpack.c.l.b16 %v583
          %v896 = vunpack.c.h.b16 %v583
          %v897 = vunpack.c.l.b16 %v584
          %v898 = vunpack.c.h.b16 %v584
          %v899 = vunpack.c.l.b16 %v585
          %v900 = vunpack.c.h.b16 %v585
          %v901 = vunpack.c.l.b16 %v586
          %v902 = vunpack.c.h.b16 %v586
          %v903 = vunpack.c.l.b16 %v587
          %v904 = vunpack.c.h.b16 %v587
          %v905 = vunpack.c.l.b16 %v588
          %v906 = vunpack.c.h.b16 %v588
          %v907 = vunpack.c.l.b16 %v589
          %v908 = vunpack.c.h.b16 %v589
          %v909 = vunpack.c.l.b16 %v590
          %v910 = vunpack.c.h.b16 %v590
          %v911 = vunpack.c.l.b16 %v591
          %v912 = vunpack.c.h.b16 %v591
          %v913 = vunpack.c.l.b16 %v592
          %v914 = vunpack.c.h.b16 %v592
          %v915 = vunpack.c.l.b16 %v593
          %v916 = vunpack.c.h.b16 %v593
          %v917 = vunpack.c.l.b16 %v594
          %v918 = vunpack.c.h.b16 %v594
          %v919 = vunpack.c.l.b16 %v595
          %v920 = vunpack.c.h.b16 %v595
          %v921 = vunpack.c.l.b16 %v596
          %v922 = vunpack.c.h.b16 %v596
          %v923 = vunpack.c.l.b16 %v597
          %v924 = vunpack.c.h.b16 %v597
          %v925 = vunpack.c.l.b16 %v598
          %v926 = vunpack.c.h.b16 %v598
          %v927 = vunpack.c.l.b16 %v599
          %v928 = vunpack.c.h.b16 %v599
          %v929 = vunpack.c.l.b16 %v600
          %v930 = vunpack.c.h.b16 %v600
          %v931 = vunpack.c.l.b16 %v601
          %v932 = vunpack.c.h.b16 %v601
          %v933 = vunpack.c.l.b16 %v602
          %v934 = vunpack.c.h.b16 %v602
          %v935 = vunpack.c.l.b16 %v603
          %v936 = vunpack.c.h.b16 %v603
          %v937 = vunpack.c.l.b16 %v604
          %v938 = vunpack.c.h.b16 %v604
          %v939 = vunpack.c.l.b16 %v605
          %v940 = vunpack.c.h.b16 %v605
          %v941 = vunpack.c.l.b16 %v606
          %v942 = vunpack.c.h.b16 %v606
          %v943 = vunpack.c.l.b16 %v607
          %v944 = vunpack.c.h.b16 %v607
          %v945 = vunpack.c.l.b16 %v608
          %v946 = vunpack.c.h.b16 %v608
          %v947 = vunpack.c.l.b16 %v609
          %v948 = vunpack.c.h.b16 %v609
          %v949 = vunpack.c.l.b16 %v610
          %v950 = vunpack.c.h.b16 %v610
          %v951 = vunpack.c.l.b16 %v611
          %v952 = vunpack.c.h.b16 %v611
          %v953 = vunpack.c.l.b16 %v612
          %v954 = vunpack.c.h.b16 %v612
          %v955 = vunpack.c.l.b16 %v613
          %v956 = vunpack.c.h.b16 %v613
          %v957 = vunpack.c.l.b16 %v614
          %v958 = vunpack.c.h.b16 %v614
          %v959 = vunpack.c.l.b16 %v615
          %v960 = vunpack.c.h.b16 %v615
          %v961 = vpack.c.b16 %v775, %v769
          %v962 = vpack.c.b16 %v776, %v770
          %v963 = vpack.c.b16 %v777, %v771
          %v964 = vpack.c.b16 %v778, %v772
          %v965 = vpack.c.b16 %v779, %v773
          %v966 = vpack.c.b16 %v780, %v774
          %v967 = vpack.c.b16 %v787, %v781
          %v968 = vpack.c.b16 %v788, %v782
          %v969 = vpack.c.b16 %v789, %v783
          %v970 = vpack.c.b16 %v790, %v784
          %v971 = vpack.c.b16 %v791, %v785
          %v972 = vpack.c.b16 %v792, %v786
          %v973 = vpack.c.b16 %v799, %v793
          %v974 = vpack.c.b16 %v800, %v794
          %v975 = vpack.c.b16 %v801, %v795
          %v976 = vpack.c.b16 %v802, %v796
          %v977 = vpack.c.b16 %v803, %v797
          %v978 = vpack.c.b16 %v804, %v798
          %v979 = vpack.c.b16 %v811, %v805
          %v980 = vpack.c.b16 %v812, %v806
          %v981 = vpack.c.b16 %v813, %v807
          %v982 = vpack.c.b16 %v814, %v808
          %v983 = vpack.c.b16 %v815, %v809
          %v984 = vpack.c.b16 %v816, %v810
          %v985 = vpack.c.b16 %v823, %v817
          %v986 = vpack.c.b16 %v824, %v818
          %v987 = vpack.c.b16 %v825, %v819
          %v988 = vpack.c.b16 %v826, %v820
          %v989 = vpack.c.b16 %v827, %v821
          %v990 = vpack.c.b16 %v828, %v822
          %v991 = vpack.c.b16 %v835, %v829
          %v992 = vpack.c.b16 %v836, %v830
          %v993 = vpack.c.b16 %v837, %v831
          %v994 = vpack.c.b16 %v838, %v832
          %v995 = vpack.c.b16 %v839, %v833
          %v996 = vpack.c.b16 %v840, %v834
          %v997 = vpack.c.b16 %v847, %v841
          %v998 = vpack.c.b16 %v848, %v842
          %v999 = vpack.c.b16 %v849, %v843
          %v1000 = vpack.c.b16 %v850, %v844
          %v1001 = vpack.c.b16 %v851, %v845
          %v1002 = vpack.c.b16 %v852, %v846
          %v1003 = vpack.c.b16 %v859, %v853
          %v1004 = vpack.c.b16 %v860, %v854
          %v1005 = vpack.c.b16 %v861, %v855
          %v1006 = vpack.c.b16 %v862, %v856
          %v1007 = vpack.c.b16 %v863, %v857
          %v1008 = vpack.c.b16 %v864, %v858
          %v1009 = vpack.c.b16 %v871, %v865
          %v1010 = vpack.c.b16 %v872, %v866
          %v1011 = vpack.c.b16 %v873, %v867
          %v1012 = vpack.c.b16 %v874, %v868
          %v1013 = vpack.c.b16 %v875, %v869
          %v1014 = vpack.c.b16 %v876, %v870
          %v1015 = vpack.c.b16 %v883, %v877
          %v1016 = vpack.c.b16 %v884, %v878
          %v1017 = vpack.c.b16 %v885, %v879
          %v1018 = vpack.c.b16 %v886, %v880
          %v1019 = vpack.c.b16 %v887, %v881
          %v1020 = vpack.c.b16 %v888, %v882
          %v1021 = vpack.c.b16 %v895, %v889
          %v1022 = vpack.c.b16 %v896, %v890
          %v1023 = vpack.c.b16 %v897, %v891
          %v1024 = vpack.c.b16 %v898, %v892
          %v1025 = vpack.c.b16 %v899, %v893
          %v1026 = vpack.c.b16 %v900, %v894
          %v1027 = vpack.c.b16 %v907, %v901
          %v1028 = vpack.c.b16 %v908, %v902
          %v1029 = vpack.c.b16 %v909, %v903
          %v1030 = vpack.c.b16 %v910, %v904
          %v1031 = vpack.c.b16 %v911, %v905
          %v1032 = vpack.c.b16 %v912, %v906
          %v1033 = vpack.c.b16 %v919, %v913
          %v1034 = vpack.c.b16 %v920, %v914
          %v1035 = vpack.c.b16 %v921, %v915
          %v1036 = vpack.c.b16 %v922, %v916
          %v1037 = vpack.c.b16 %v923, %v917
          %v1038 = vpack.c.b16 %v924, %v918
          %v1039 = vpack.c.b16 %v931, %v925
          %v1040 = vpack.c.b16 %v932, %v926
          %v1041 = vpack.c.b16 %v933, %v927
          %v1042 = vpack.c.b16 %v934, %v928
          %v1043 = vpack.c.b16 %v935, %v929
          %v1044 = vpack.c.b16 %v936, %v930
          %v1045 = vpack.c.b16 %v943, %v937
          %v1046 = vpack.c.b16 %v944, %v938
          %v1047 = vpack.c.b16 %v945, %v939
          %v1048 = vpack.c.b16 %v946, %v940
          %v1049 = vpack.c.b16 %v947, %v941
          %v1050 = vpack.c.b16 %v948, %v942
          %v1051 = vpack.c.b16 %v955, %v949
          %v1052 = vpack.c.b16 %v956, %v950
          %v1053 = vpack.c.b16 %v957, %v951
          %v1054 = vpack.c.b16 %v958, %v952
          %v1055 = vpack.c.b16 %v959, %v953
          %v1056 = vpack.c.b16 %v960, %v954
          %1153 = vmatprep.subr.bf16.mxu0 %v962
          %1154 = vmatpush1.bf16.msra.mxu0 %v961
          %1155 = vmatprep.subr.bf16.mxu0 %v968
          %1156 = vmatpush1.bf16.msra.mxu0 %v967
          %1157 = vmatprep.subr.bf16.mxu0 %v974
          %1158 = vmatpush1.bf16.msra.mxu0 %v973
          %1159 = vmatprep.subr.bf16.mxu0 %v980
          %1160 = vmatpush1.bf16.msra.mxu0 %v979
          %1161 = vmatprep.subr.bf16.mxu0 %v986
          %1162 = vmatpush1.bf16.msra.mxu0 %v985
          %1163 = vmatprep.subr.bf16.mxu0 %v992
          %1164 = vmatpush1.bf16.msra.mxu0 %v991
          %1165 = vmatprep.subr.bf16.mxu0 %v998
          %1166 = vmatpush1.bf16.msra.mxu0 %v997
          %1167 = vmatprep.subr.bf16.mxu0 %v1004
          %1168 = vmatpush1.bf16.msra.mxu0 %v1003
          %1169 = vmatprep.subr.bf16.mxu0 %v1010
          %1170 = vmatpush1.bf16.msra.mxu0 %v1009
          %1171 = vmatprep.subr.bf16.mxu0 %v1016
          %1172 = vmatpush1.bf16.msra.mxu0 %v1015
          %1173 = vmatprep.subr.bf16.mxu0 %v1022
          %1174 = vmatpush1.bf16.msra.mxu0 %v1021
          %1175 = vmatprep.subr.bf16.mxu0 %v1028
          %1176 = vmatpush1.bf16.msra.mxu0 %v1027
          %1177 = vmatprep.subr.bf16.mxu0 %v1034
          %1178 = vmatpush1.bf16.msra.mxu0 %v1033
          %1179 = vmatprep.subr.bf16.mxu0 %v1040
          %1180 = vmatpush1.bf16.msra.mxu0 %v1039
          %1181 = vmatprep.subr.bf16.mxu0 %v1046
          %1182 = vmatpush1.bf16.msra.mxu0 %v1045
          %1183 = vmatprep.subr.bf16.mxu0 %v1052
          %1184 = vmatpush1.bf16.msra.mxu0 %v1051
          %1185 = vmatprep.mubr.bf16.mxu0 %v670
          %1186 = vmatmul.mubr.bf16.gmra.mrb[0].mxu0 %v663
          %v1187 = vpop.f32.mrb[0].mxu0
          %v1188 = vadd.f32 %v621, %v1187
          %v1189 = vpop.f32.mrb[0].mxu0
          %v1190 = vadd.f32 %v625, %v1189
          %v1191 = vpop.f32.mrb[0].mxu0
          %v1192 = vpop.f32.mrb[0].mxu0
          %1193 = vdwg.mxu0
          %1194 = vmatprep.subr.bf16.mxu0 %v964
          %1195 = vmatpush1.bf16.msra.mxu0 %v963
          %1196 = vmatprep.subr.bf16.mxu0 %v970
          %1197 = vmatpush1.bf16.msra.mxu0 %v969
          %1198 = vmatprep.subr.bf16.mxu0 %v976
          %1199 = vmatpush1.bf16.msra.mxu0 %v975
          %1200 = vmatprep.subr.bf16.mxu0 %v982
          %1201 = vmatpush1.bf16.msra.mxu0 %v981
          %1202 = vmatprep.subr.bf16.mxu0 %v988
          %1203 = vmatpush1.bf16.msra.mxu0 %v987
          %1204 = vmatprep.subr.bf16.mxu0 %v994
          %1205 = vmatpush1.bf16.msra.mxu0 %v993
          %1206 = vmatprep.subr.bf16.mxu0 %v1000
          %1207 = vmatpush1.bf16.msra.mxu0 %v999
          %1208 = vmatprep.subr.bf16.mxu0 %v1006
          %1209 = vmatpush1.bf16.msra.mxu0 %v1005
          %1210 = vmatprep.subr.bf16.mxu0 %v1012
          %1211 = vmatpush1.bf16.msra.mxu0 %v1011
          %1212 = vmatprep.subr.bf16.mxu0 %v1018
          %1213 = vmatpush1.bf16.msra.mxu0 %v1017
          %1214 = vmatprep.subr.bf16.mxu0 %v1024
          %1215 = vmatpush1.bf16.msra.mxu0 %v1023
          %1216 = vmatprep.subr.bf16.mxu0 %v1030
          %1217 = vmatpush1.bf16.msra.mxu0 %v1029
          %1218 = vmatprep.subr.bf16.mxu0 %v1036
          %1219 = vmatpush1.bf16.msra.mxu0 %v1035
          %1220 = vmatprep.subr.bf16.mxu0 %v1042
          %1221 = vmatpush1.bf16.msra.mxu0 %v1041
          %1222 = vmatprep.subr.bf16.mxu0 %v1048
          %1223 = vmatpush1.bf16.msra.mxu0 %v1047
          %1224 = vmatprep.subr.bf16.mxu0 %v1054
          %1225 = vmatpush1.bf16.msra.mxu0 %v1053
          %1226 = vmatprep.mubr.bf16.mxu0 %v670
          %1227 = vmatmul.mubr.bf16.gmra.mrb[0].mxu0 %v663
          %v1228 = vpop.f32.mrb[0].mxu0
          %v1229 = vadd.f32 %v629, %v1228
          %v1230 = vpop.f32.mrb[0].mxu0
          %v1231 = vadd.f32 %v633, %v1230
          %v1232 = vpop.f32.mrb[0].mxu0
          %v1233 = vpop.f32.mrb[0].mxu0
          %1234 = vdwg.mxu0
          %1235 = vmatprep.subr.bf16.mxu0 %v966
          %1236 = vmatpush1.bf16.msra.mxu0 %v965
          %1237 = vmatprep.subr.bf16.mxu0 %v972
          %1238 = vmatpush1.bf16.msra.mxu0 %v971
          %1239 = vmatprep.subr.bf16.mxu0 %v978
          %1240 = vmatpush1.bf16.msra.mxu0 %v977
          %1241 = vmatprep.subr.bf16.mxu0 %v984
          %1242 = vmatpush1.bf16.msra.mxu0 %v983
          %1243 = vmatprep.subr.bf16.mxu0 %v990
          %1244 = vmatpush1.bf16.msra.mxu0 %v989
          %1245 = vmatprep.subr.bf16.mxu0 %v996
          %1246 = vmatpush1.bf16.msra.mxu0 %v995
          %1247 = vmatprep.subr.bf16.mxu0 %v1002
          %1248 = vmatpush1.bf16.msra.mxu0 %v1001
          %1249 = vmatprep.subr.bf16.mxu0 %v1008
          %1250 = vmatpush1.bf16.msra.mxu0 %v1007
          %1251 = vmatprep.subr.bf16.mxu0 %v1014
          %1252 = vmatpush1.bf16.msra.mxu0 %v1013
          %1253 = vmatprep.subr.bf16.mxu0 %v1020
          %1254 = vmatpush1.bf16.msra.mxu0 %v1019
          %1255 = vmatprep.subr.bf16.mxu0 %v1026
          %1256 = vmatpush1.bf16.msra.mxu0 %v1025
          %1257 = vmatprep.subr.bf16.mxu0 %v1032
          %1258 = vmatpush1.bf16.msra.mxu0 %v1031
          %1259 = vmatprep.subr.bf16.mxu0 %v1038
          %1260 = vmatpush1.bf16.msra.mxu0 %v1037
          %1261 = vmatprep.subr.bf16.mxu0 %v1044
          %1262 = vmatpush1.bf16.msra.mxu0 %v1043
          %1263 = vmatprep.subr.bf16.mxu0 %v1050
          %1264 = vmatpush1.bf16.msra.mxu0 %v1049
          %1265 = vmatprep.subr.bf16.mxu0 %v1056
          %1266 = vmatpush1.bf16.msra.mxu0 %v1055
          %1267 = vmatprep.mubr.bf16.mxu0 %v670
          %1268 = vmatmul.mubr.bf16.gmra.mrb[0].mxu0 %v663
          %v1269 = vpop.f32.mrb[0].mxu0
          %v1270 = vadd.f32 %v637, %v1269
          %v1271 = vpop.f32.mrb[0].mxu0
          %v1272 = vadd.f32 %v641, %v1271
          %v1273 = vpop.f32.mrb[0].mxu0
          %v1274 = vpop.f32.mrb[0].mxu0
          %1275 = vdwg.mxu0
          %v1276 = vmax.f32 %v1229, 0.0
          %v1277 = vmax.f32 %v1231, 0.0
          %v1278 = vmax.f32 %v1270, 0.0
          %v1279 = vmax.f32 %v1272, 0.0
          %v1280 = vpack.c.bf16 %v517, %v517
          %v1281 = vpack.c.bf16 %v518, %v518
          %v1282 = vpack.c.bf16 %v1188, %v1188
          %v1283 = vpack.c.bf16 %v1190, %v1190
          %v1284 = vpack.c.bf16 %v1276, %v1276
          %v1285 = vpack.c.bf16 %v1277, %v1277
          %v1286 = vpack.c.bf16 %v1278, %v1278
          %v1287 = vpack.c.bf16 %v1279, %v1279
          %v1288 = vld [vmem:[#allocation7] sm:$0xf]
          %v1289 = vld [vmem:[#allocation7 + $0x4] sm:$0xf]
          %v1290 = vld [vmem:[#allocation7 + $0x8] sm:$0xf]
          %v1291 = vld [vmem:[#allocation7 + $0xc] sm:$0xf]
          %v1292 = vld [vmem:[#allocation7 + $0x10] sm:$0xf]
          %v1293 = vld [vmem:[#allocation7 + $0x14] sm:$0xf]
          %v1294 = vld [vmem:[#allocation7 + $0x18] sm:$0xf]
          %v1295 = vld [vmem:[#allocation7 + $0x1c] sm:$0xf]
          %v1296 = vld [vmem:[#allocation7 + $0x20] sm:$0xf]
          %v1297 = vld [vmem:[#allocation7 + $0x24] sm:$0xf]
          %v1298 = vld [vmem:[#allocation7 + $0x28] sm:$0xf]
          %v1299 = vld [vmem:[#allocation7 + $0x2c] sm:$0xf]
          %v1300 = vld [vmem:[#allocation7 + $0x30] sm:$0xf]
          %v1301 = vld [vmem:[#allocation7 + $0x34] sm:$0xf]
          %v1302 = vld [vmem:[#allocation7 + $0x38] sm:$0xf]
          %v1303 = vld [vmem:[#allocation7 + $0x3c] sm:$0xf]
          %v1304 = vld [vmem:[#allocation7 + $0x40] sm:$0xf]
          %v1305 = vld [vmem:[#allocation7 + $0x44] sm:$0xf]
          %v1306 = vld [vmem:[#allocation7 + $0x48] sm:$0xf]
          %v1307 = vld [vmem:[#allocation7 + $0x4c] sm:$0xf]
          %v1308 = vld [vmem:[#allocation7 + $0x50] sm:$0xf]
          %v1309 = vld [vmem:[#allocation7 + $0x54] sm:$0xf]
          %v1310 = vld [vmem:[#allocation7 + $0x58] sm:$0xf]
          %v1311 = vld [vmem:[#allocation7 + $0x5c] sm:$0xf]
          %v1312 = vld [vmem:[#allocation7 + $0x60] sm:$0xf]
          %v1313 = vld [vmem:[#allocation7 + $0x64] sm:$0xf]
          %v1314 = vld [vmem:[#allocation7 + $0x68] sm:$0xf]
          %v1315 = vld [vmem:[#allocation7 + $0x6c] sm:$0xf]
          %v1316 = vld [vmem:[#allocation7 + $0x70] sm:$0xf]
          %v1317 = vld [vmem:[#allocation7 + $0x74] sm:$0xf]
          %v1318 = vld [vmem:[#allocation7 + $0x78] sm:$0xf]
          %v1319 = vld [vmem:[#allocation7 + $0x7c] sm:$0xf]
          %v1320 = vld [vmem:[#allocation7 + $0x80] sm:$0xf]
          %v1321 = vld [vmem:[#allocation7 + $0x84] sm:$0xf]
          %v1322 = vld [vmem:[#allocation7 + $0x88] sm:$0xf]
          %v1323 = vld [vmem:[#allocation7 + $0x8c] sm:$0xf]
          %v1324 = vld [vmem:[#allocation7 + $0x90] sm:$0xf]
          %v1325 = vld [vmem:[#allocation7 + $0x94] sm:$0xf]
          %v1326 = vld [vmem:[#allocation7 + $0x98] sm:$0xf]
          %v1327 = vld [vmem:[#allocation7 + $0x9c] sm:$0xf]
          %v1328 = vld [vmem:[#allocation7 + $0xa0] sm:$0xf]
          %v1329 = vld [vmem:[#allocation7 + $0xa4] sm:$0xf]
          %v1330 = vld [vmem:[#allocation7 + $0xa8] sm:$0xf]
          %v1331 = vld [vmem:[#allocation7 + $0xac] sm:$0xf]
          %v1332 = vld [vmem:[#allocation7 + $0xb0] sm:$0xf]
          %v1333 = vld [vmem:[#allocation7 + $0xb4] sm:$0xf]
          %v1334 = vld [vmem:[#allocation7 + $0xb8] sm:$0xf]
          %v1335 = vld [vmem:[#allocation7 + $0xbc] sm:$0xf]
          %v1336 = vld [vmem:[#allocation7 + $0xc0] sm:$0xf]
          %v1337 = vld [vmem:[#allocation7 + $0xc4] sm:$0xf]
          %v1338 = vld [vmem:[#allocation7 + $0xc8] sm:$0xf]
          %v1339 = vld [vmem:[#allocation7 + $0xcc] sm:$0xf]
          %v1340 = vld [vmem:[#allocation7 + $0xd0] sm:$0xf]
          %v1341 = vld [vmem:[#allocation7 + $0xd4] sm:$0xf]
          %v1342 = vld [vmem:[#allocation7 + $0xd8] sm:$0xf]
          %v1343 = vld [vmem:[#allocation7 + $0xdc] sm:$0xf]
          %v1344 = vld [vmem:[#allocation7 + $0xe0] sm:$0xf]
          %v1345 = vld [vmem:[#allocation7 + $0xe4] sm:$0xf]
          %v1346 = vld [vmem:[#allocation7 + $0xe8] sm:$0xf]
          %v1347 = vld [vmem:[#allocation7 + $0xec] sm:$0xf]
          %v1348 = vld [vmem:[#allocation7 + $0xf0] sm:$0xf]
          %v1349 = vld [vmem:[#allocation7 + $0xf4] sm:$0xf]
          %v1350 = vld [vmem:[#allocation7 + $0xf8] sm:$0xf]
          %v1351 = vld [vmem:[#allocation7 + $0xfc] sm:$0xf]
          %v1352 = vld [vmem:[#allocation7 + $0x100] sm:$0xf]
          %v1353 = vld [vmem:[#allocation7 + $0x104] sm:$0xf]
          %v1354 = vld [vmem:[#allocation7 + $0x108] sm:$0xf]
          %v1355 = vld [vmem:[#allocation7 + $0x10c] sm:$0xf]
          %v1356 = vld [vmem:[#allocation7 + $0x110] sm:$0xf]
          %v1357 = vld [vmem:[#allocation7 + $0x114] sm:$0xf]
          %v1358 = vld [vmem:[#allocation7 + $0x118] sm:$0xf]
          %v1359 = vld [vmem:[#allocation7 + $0x11c] sm:$0xf]
          %v1360 = vld [vmem:[#allocation7 + $0x120] sm:$0xf]
          %v1361 = vld [vmem:[#allocation7 + $0x124] sm:$0xf]
          %v1362 = vld [vmem:[#allocation7 + $0x128] sm:$0xf]
          %v1363 = vld [vmem:[#allocation7 + $0x12c] sm:$0xf]
          %v1364 = vld [vmem:[#allocation7 + $0x130] sm:$0xf]
          %v1365 = vld [vmem:[#allocation7 + $0x134] sm:$0xf]
          %v1366 = vld [vmem:[#allocation7 + $0x138] sm:$0xf]
          %v1367 = vld [vmem:[#allocation7 + $0x13c] sm:$0xf]
          %v1368 = vld [vmem:[#allocation7 + $0x140] sm:$0xf]
          %v1369 = vld [vmem:[#allocation7 + $0x144] sm:$0xf]
          %v1370 = vld [vmem:[#allocation7 + $0x148] sm:$0xf]
          %v1371 = vld [vmem:[#allocation7 + $0x14c] sm:$0xf]
          %v1372 = vld [vmem:[#allocation7 + $0x150] sm:$0xf]
          %v1373 = vld [vmem:[#allocation7 + $0x154] sm:$0xf]
          %v1374 = vld [vmem:[#allocation7 + $0x158] sm:$0xf]
          %v1375 = vld [vmem:[#allocation7 + $0x15c] sm:$0xf]
          %v1376 = vld [vmem:[#allocation7 + $0x160] sm:$0xf]
          %v1377 = vld [vmem:[#allocation7 + $0x164] sm:$0xf]
          %v1378 = vld [vmem:[#allocation7 + $0x168] sm:$0xf]
          %v1379 = vld [vmem:[#allocation7 + $0x16c] sm:$0xf]
          %v1380 = vld [vmem:[#allocation7 + $0x170] sm:$0xf]
          %v1381 = vld [vmem:[#allocation7 + $0x174] sm:$0xf]
          %v1382 = vld [vmem:[#allocation7 + $0x178] sm:$0xf]
          %v1383 = vld [vmem:[#allocation7 + $0x17c] sm:$0xf]
          %v1384 = vld [vmem:[#allocation7 + $0x180] sm:$0xf]
          %v1385 = vld [vmem:[#allocation7 + $0x184] sm:$0xf]
          %v1386 = vld [vmem:[#allocation7 + $0x188] sm:$0xf]
          %v1387 = vld [vmem:[#allocation7 + $0x18c] sm:$0xf]
          %v1388 = vld [vmem:[#allocation7 + $0x190] sm:$0xf]
          %v1389 = vld [vmem:[#allocation7 + $0x194] sm:$0xf]
          %v1390 = vld [vmem:[#allocation7 + $0x198] sm:$0xf]
          %v1391 = vld [vmem:[#allocation7 + $0x19c] sm:$0xf]
          %v1392 = vld [vmem:[#allocation7 + $0x1a0] sm:$0xf]
          %v1393 = vld [vmem:[#allocation7 + $0x1a4] sm:$0xf]
          %v1394 = vld [vmem:[#allocation7 + $0x1a8] sm:$0xf]
          %v1395 = vld [vmem:[#allocation7 + $0x1ac] sm:$0xf]
          %v1396 = vld [vmem:[#allocation7 + $0x1b0] sm:$0xf]
          %v1397 = vld [vmem:[#allocation7 + $0x1b4] sm:$0xf]
          %v1398 = vld [vmem:[#allocation7 + $0x1b8] sm:$0xf]
          %v1399 = vld [vmem:[#allocation7 + $0x1bc] sm:$0xf]
          %v1400 = vld [vmem:[#allocation7 + $0x1c0] sm:$0xf]
          %v1401 = vld [vmem:[#allocation7 + $0x1c4] sm:$0xf]
          %v1402 = vld [vmem:[#allocation7 + $0x1c8] sm:$0xf]
          %v1403 = vld [vmem:[#allocation7 + $0x1cc] sm:$0xf]
          %v1404 = vld [vmem:[#allocation7 + $0x1d0] sm:$0xf]
          %v1405 = vld [vmem:[#allocation7 + $0x1d4] sm:$0xf]
          %v1406 = vld [vmem:[#allocation7 + $0x1d8] sm:$0xf]
          %v1407 = vld [vmem:[#allocation7 + $0x1dc] sm:$0xf]
          %v1408 = vld [vmem:[#allocation7 + $0x1e0] sm:$0xf]
          %v1409 = vld [vmem:[#allocation7 + $0x1e4] sm:$0xf]
          %v1410 = vld [vmem:[#allocation7 + $0x1e8] sm:$0xf]
          %v1411 = vld [vmem:[#allocation7 + $0x1ec] sm:$0xf]
          %v1412 = vld [vmem:[#allocation7 + $0x1f0] sm:$0xf]
          %v1413 = vld [vmem:[#allocation7 + $0x1f4] sm:$0xf]
          %v1414 = vld [vmem:[#allocation7 + $0x1f8] sm:$0xf]
          %v1415 = vld [vmem:[#allocation7 + $0x1fc] sm:$0xf]
          %v1416 = vld [vmem:[%s7] sm:$0x1]
          %v1418 = vlaneseq
          %v1419 = vshrl.u32 %v1418, 7
          %v1420 = vsub.s32 0, %v1419
          %v1421 = vrot.slane %v1416, %v1420
          %v1551 = vunpack.c.l.b16 %v1288
          %v1552 = vunpack.c.l.b16 %v1289
          %v1553 = vunpack.c.l.b16 %v1290
          %v1554 = vunpack.c.l.b16 %v1291
          %v1555 = vunpack.c.l.b16 %v1292
          %v1556 = vunpack.c.l.b16 %v1293
          %v1557 = vunpack.c.l.b16 %v1294
          %v1558 = vunpack.c.l.b16 %v1295
          %v1559 = vunpack.c.l.b16 %v1296
          %v1560 = vunpack.c.l.b16 %v1297
          %v1561 = vunpack.c.l.b16 %v1298
          %v1562 = vunpack.c.l.b16 %v1299
          %v1563 = vunpack.c.l.b16 %v1300
          %v1564 = vunpack.c.l.b16 %v1301
          %v1565 = vunpack.c.l.b16 %v1302
          %v1566 = vunpack.c.l.b16 %v1303
          %v1567 = vunpack.c.l.b16 %v1304
          %v1568 = vunpack.c.l.b16 %v1305
          %v1569 = vunpack.c.l.b16 %v1306
          %v1570 = vunpack.c.l.b16 %v1307
          %v1571 = vunpack.c.l.b16 %v1308
          %v1572 = vunpack.c.l.b16 %v1309
          %v1573 = vunpack.c.l.b16 %v1310
          %v1574 = vunpack.c.l.b16 %v1311
          %v1575 = vunpack.c.l.b16 %v1312
          %v1576 = vunpack.c.l.b16 %v1313
          %v1577 = vunpack.c.l.b16 %v1314
          %v1578 = vunpack.c.l.b16 %v1315
          %v1579 = vunpack.c.l.b16 %v1316
          %v1580 = vunpack.c.l.b16 %v1317
          %v1581 = vunpack.c.l.b16 %v1318
          %v1582 = vunpack.c.l.b16 %v1319
          %v1583 = vunpack.c.l.b16 %v1320
          %v1584 = vunpack.c.l.b16 %v1321
          %v1585 = vunpack.c.l.b16 %v1322
          %v1586 = vunpack.c.l.b16 %v1323
          %v1587 = vunpack.c.l.b16 %v1324
          %v1588 = vunpack.c.l.b16 %v1325
          %v1589 = vunpack.c.l.b16 %v1326
          %v1590 = vunpack.c.l.b16 %v1327
          %v1591 = vunpack.c.l.b16 %v1328
          %v1592 = vunpack.c.l.b16 %v1329
          %v1593 = vunpack.c.l.b16 %v1330
          %v1594 = vunpack.c.l.b16 %v1331
          %v1595 = vunpack.c.l.b16 %v1332
          %v1596 = vunpack.c.l.b16 %v1333
          %v1597 = vunpack.c.l.b16 %v1334
          %v1598 = vunpack.c.l.b16 %v1335
          %v1599 = vunpack.c.l.b16 %v1336
          %v1600 = vunpack.c.l.b16 %v1337
          %v1601 = vunpack.c.l.b16 %v1338
          %v1602 = vunpack.c.l.b16 %v1339
          %v1603 = vunpack.c.l.b16 %v1340
          %v1604 = vunpack.c.l.b16 %v1341
          %v1605 = vunpack.c.l.b16 %v1342
          %v1606 = vunpack.c.l.b16 %v1343
          %v1607 = vunpack.c.l.b16 %v1344
          %v1608 = vunpack.c.l.b16 %v1345
          %v1609 = vunpack.c.l.b16 %v1346
          %v1610 = vunpack.c.l.b16 %v1347
          %v1611 = vunpack.c.l.b16 %v1348
          %v1612 = vunpack.c.l.b16 %v1349
          %v1613 = vunpack.c.l.b16 %v1350
          %v1614 = vunpack.c.l.b16 %v1351
          %v1615 = vunpack.c.l.b16 %v1352
          %v1616 = vunpack.c.l.b16 %v1353
          %v1617 = vunpack.c.l.b16 %v1354
          %v1618 = vunpack.c.l.b16 %v1355
          %v1619 = vunpack.c.l.b16 %v1356
          %v1620 = vunpack.c.l.b16 %v1357
          %v1621 = vunpack.c.l.b16 %v1358
          %v1622 = vunpack.c.l.b16 %v1359
          %v1623 = vunpack.c.l.b16 %v1360
          %v1624 = vunpack.c.l.b16 %v1361
          %v1625 = vunpack.c.l.b16 %v1362
          %v1626 = vunpack.c.l.b16 %v1363
          %v1627 = vunpack.c.l.b16 %v1364
          %v1628 = vunpack.c.l.b16 %v1365
          %v1629 = vunpack.c.l.b16 %v1366
          %v1630 = vunpack.c.l.b16 %v1367
          %v1631 = vunpack.c.l.b16 %v1368
          %v1632 = vunpack.c.l.b16 %v1369
          %v1633 = vunpack.c.l.b16 %v1370
          %v1634 = vunpack.c.l.b16 %v1371
          %v1635 = vunpack.c.l.b16 %v1372
          %v1636 = vunpack.c.l.b16 %v1373
          %v1637 = vunpack.c.l.b16 %v1374
          %v1638 = vunpack.c.l.b16 %v1375
          %v1639 = vunpack.c.l.b16 %v1376
          %v1640 = vunpack.c.l.b16 %v1377
          %v1641 = vunpack.c.l.b16 %v1378
          %v1642 = vunpack.c.l.b16 %v1379
          %v1643 = vunpack.c.l.b16 %v1380
          %v1644 = vunpack.c.l.b16 %v1381
          %v1645 = vunpack.c.l.b16 %v1382
          %v1646 = vunpack.c.l.b16 %v1383
          %v1647 = vunpack.c.l.b16 %v1384
          %v1648 = vunpack.c.l.b16 %v1385
          %v1649 = vunpack.c.l.b16 %v1386
          %v1650 = vunpack.c.l.b16 %v1387
          %v1651 = vunpack.c.l.b16 %v1388
          %v1652 = vunpack.c.l.b16 %v1389
          %v1653 = vunpack.c.l.b16 %v1390
          %v1654 = vunpack.c.l.b16 %v1391
          %v1655 = vunpack.c.l.b16 %v1392
          %v1656 = vunpack.c.l.b16 %v1393
          %v1657 = vunpack.c.l.b16 %v1394
          %v1658 = vunpack.c.l.b16 %v1395
          %v1659 = vunpack.c.l.b16 %v1396
          %v1660 = vunpack.c.l.b16 %v1397
          %v1661 = vunpack.c.l.b16 %v1398
          %v1662 = vunpack.c.l.b16 %v1399
          %v1663 = vunpack.c.l.b16 %v1400
          %v1664 = vunpack.c.l.b16 %v1401
          %v1665 = vunpack.c.l.b16 %v1402
          %v1666 = vunpack.c.l.b16 %v1403
          %v1667 = vunpack.c.l.b16 %v1404
          %v1668 = vunpack.c.l.b16 %v1405
          %v1669 = vunpack.c.l.b16 %v1406
          %v1670 = vunpack.c.l.b16 %v1407
          %v1671 = vunpack.c.l.b16 %v1408
          %v1672 = vunpack.c.l.b16 %v1409
          %v1673 = vunpack.c.l.b16 %v1410
          %v1674 = vunpack.c.l.b16 %v1411
          %v1675 = vunpack.c.l.b16 %v1412
          %v1676 = vunpack.c.l.b16 %v1413
          %v1677 = vunpack.c.l.b16 %v1414
          %v1678 = vunpack.c.l.b16 %v1415
          %v1679 = vpack.c.b16 %v1552, %v1551
          %v1680 = vpack.c.b16 %v1554, %v1553
          %v1681 = vpack.c.b16 %v1556, %v1555
          %v1682 = vpack.c.b16 %v1558, %v1557
          %v1683 = vpack.c.b16 %v1560, %v1559
          %v1684 = vpack.c.b16 %v1562, %v1561
          %v1685 = vpack.c.b16 %v1564, %v1563
          %v1686 = vpack.c.b16 %v1566, %v1565
          %v1687 = vpack.c.b16 %v1568, %v1567
          %v1688 = vpack.c.b16 %v1570, %v1569
          %v1689 = vpack.c.b16 %v1572, %v1571
          %v1690 = vpack.c.b16 %v1574, %v1573
          %v1691 = vpack.c.b16 %v1576, %v1575
          %v1692 = vpack.c.b16 %v1578, %v1577
          %v1693 = vpack.c.b16 %v1580, %v1579
          %v1694 = vpack.c.b16 %v1582, %v1581
          %v1695 = vpack.c.b16 %v1584, %v1583
          %v1696 = vpack.c.b16 %v1586, %v1585
          %v1697 = vpack.c.b16 %v1588, %v1587
          %v1698 = vpack.c.b16 %v1590, %v1589
          %v1699 = vpack.c.b16 %v1592, %v1591
          %v1700 = vpack.c.b16 %v1594, %v1593
          %v1701 = vpack.c.b16 %v1596, %v1595
          %v1702 = vpack.c.b16 %v1598, %v1597
          %v1703 = vpack.c.b16 %v1600, %v1599
          %v1704 = vpack.c.b16 %v1602, %v1601
          %v1705 = vpack.c.b16 %v1604, %v1603
          %v1706 = vpack.c.b16 %v1606, %v1605
          %v1707 = vpack.c.b16 %v1608, %v1607
          %v1708 = vpack.c.b16 %v1610, %v1609
          %v1709 = vpack.c.b16 %v1612, %v1611
          %v1710 = vpack.c.b16 %v1614, %v1613
          %v1711 = vpack.c.b16 %v1616, %v1615
          %v1712 = vpack.c.b16 %v1618, %v1617
          %v1713 = vpack.c.b16 %v1620, %v1619
          %v1714 = vpack.c.b16 %v1622, %v1621
          %v1715 = vpack.c.b16 %v1624, %v1623
          %v1716 = vpack.c.b16 %v1626, %v1625
          %v1717 = vpack.c.b16 %v1628, %v1627
          %v1718 = vpack.c.b16 %v1630, %v1629
          %v1719 = vpack.c.b16 %v1632, %v1631
          %v1720 = vpack.c.b16 %v1634, %v1633
          %v1721 = vpack.c.b16 %v1636, %v1635
          %v1722 = vpack.c.b16 %v1638, %v1637
          %v1723 = vpack.c.b16 %v1640, %v1639
          %v1724 = vpack.c.b16 %v1642, %v1641
          %v1725 = vpack.c.b16 %v1644, %v1643
          %v1726 = vpack.c.b16 %v1646, %v1645
          %v1727 = vpack.c.b16 %v1648, %v1647
          %v1728 = vpack.c.b16 %v1650, %v1649
          %v1729 = vpack.c.b16 %v1652, %v1651
          %v1730 = vpack.c.b16 %v1654, %v1653
          %v1731 = vpack.c.b16 %v1656, %v1655
          %v1732 = vpack.c.b16 %v1658, %v1657
          %v1733 = vpack.c.b16 %v1660, %v1659
          %v1734 = vpack.c.b16 %v1662, %v1661
          %v1735 = vpack.c.b16 %v1664, %v1663
          %v1736 = vpack.c.b16 %v1666, %v1665
          %v1737 = vpack.c.b16 %v1668, %v1667
          %v1738 = vpack.c.b16 %v1670, %v1669
          %v1739 = vpack.c.b16 %v1672, %v1671
          %v1740 = vpack.c.b16 %v1674, %v1673
          %v1741 = vpack.c.b16 %v1676, %v1675
          %v1742 = vpack.c.b16 %v1678, %v1677
          %1807 = vmatprep.subr.bf16.mxu0 0
          %1808 = vmatpush1.bf16.msra.mxu0 %v1679
          %1809 = vmatprep.subr.bf16.mxu0 0
          %1810 = vmatpush1.bf16.msra.mxu0 %v1680
          %1811 = vmatprep.subr.bf16.mxu0 0
          %1812 = vmatpush1.bf16.msra.mxu0 %v1681
          %1813 = vmatprep.subr.bf16.mxu0 0
          %1814 = vmatpush1.bf16.msra.mxu0 %v1682
          %1815 = vmatprep.subr.bf16.mxu0 0
          %1816 = vmatpush1.bf16.msra.mxu0 %v1683
          %1817 = vmatprep.subr.bf16.mxu0 0
          %1818 = vmatpush1.bf16.msra.mxu0 %v1684
          %1819 = vmatprep.subr.bf16.mxu0 0
          %1820 = vmatpush1.bf16.msra.mxu0 %v1685
          %1821 = vmatprep.subr.bf16.mxu0 0
          %1822 = vmatpush1.bf16.msra.mxu0 %v1686
          %1823 = vmatprep.subr.bf16.mxu0 0
          %1824 = vmatpush1.bf16.msra.mxu0 %v1687
          %1825 = vmatprep.subr.bf16.mxu0 0
          %1826 = vmatpush1.bf16.msra.mxu0 %v1688
          %1827 = vmatprep.subr.bf16.mxu0 0
          %1828 = vmatpush1.bf16.msra.mxu0 %v1689
          %1829 = vmatprep.subr.bf16.mxu0 0
          %1830 = vmatpush1.bf16.msra.mxu0 %v1690
          %1831 = vmatprep.subr.bf16.mxu0 0
          %1832 = vmatpush1.bf16.msra.mxu0 %v1691
          %1833 = vmatprep.subr.bf16.mxu0 0
          %1834 = vmatpush1.bf16.msra.mxu0 %v1692
          %1835 = vmatprep.subr.bf16.mxu0 0
          %1836 = vmatpush1.bf16.msra.mxu0 %v1693
          %1837 = vmatprep.subr.bf16.mxu0 0
          %1838 = vmatpush1.bf16.msra.mxu0 %v1694
          %1839 = vmatprep.mubr.bf16.mxu0 %v1281
          %1840 = vmatmul.mubr.bf16.gmra.mrb[0].mxu0 %v1280
          %v1841 = vpop.f32.mrb[0].mxu0
          %v1842 = vadd.f32 %v1421, %v1841
          %v1843 = vpop.f32.mrb[0].mxu0
          %v1844 = vpop.f32.mrb[0].mxu0
          %v1845 = vpop.f32.mrb[0].mxu0
          %1846 = vdwg.mxu0
          %1847 = vmatprep.subr.bf16.mxu0 0
          %1848 = vmatpush1.bf16.msra.mxu0 %v1695
          %1849 = vmatprep.subr.bf16.mxu0 0
          %1850 = vmatpush1.bf16.msra.mxu0 %v1696
          %1851 = vmatprep.subr.bf16.mxu0 0
          %1852 = vmatpush1.bf16.msra.mxu0 %v1697
          %1853 = vmatprep.subr.bf16.mxu0 0
          %1854 = vmatpush1.bf16.msra.mxu0 %v1698
          %1855 = vmatprep.subr.bf16.mxu0 0
          %1856 = vmatpush1.bf16.msra.mxu0 %v1699
          %1857 = vmatprep.subr.bf16.mxu0 0
          %1858 = vmatpush1.bf16.msra.mxu0 %v1700
          %1859 = vmatprep.subr.bf16.mxu0 0
          %1860 = vmatpush1.bf16.msra.mxu0 %v1701
          %1861 = vmatprep.subr.bf16.mxu0 0
          %1862 = vmatpush1.bf16.msra.mxu0 %v1702
          %1863 = vmatprep.subr.bf16.mxu0 0
          %1864 = vmatpush1.bf16.msra.mxu0 %v1703
          %1865 = vmatprep.subr.bf16.mxu0 0
          %1866 = vmatpush1.bf16.msra.mxu0 %v1704
          %1867 = vmatprep.subr.bf16.mxu0 0
          %1868 = vmatpush1.bf16.msra.mxu0 %v1705
          %1869 = vmatprep.subr.bf16.mxu0 0
          %1870 = vmatpush1.bf16.msra.mxu0 %v1706
          %1871 = vmatprep.subr.bf16.mxu0 0
          %1872 = vmatpush1.bf16.msra.mxu0 %v1707
          %1873 = vmatprep.subr.bf16.mxu0 0
          %1874 = vmatpush1.bf16.msra.mxu0 %v1708
          %1875 = vmatprep.subr.bf16.mxu0 0
          %1876 = vmatpush1.bf16.msra.mxu0 %v1709
          %1877 = vmatprep.subr.bf16.mxu0 0
          %1878 = vmatpush1.bf16.msra.mxu0 %v1710
          %1879 = vmatprep.mubr.bf16.mxu0 %v1283
          %1880 = vmatmul.mubr.bf16.gmra.mrb[0].mxu0 %v1282
          %v1881 = vpop.f32.mrb[0].mxu0
          %v1882 = vadd.f32 %v1842, %v1881
          %v1883 = vpop.f32.mrb[0].mxu0
          %v1884 = vpop.f32.mrb[0].mxu0
          %v1885 = vpop.f32.mrb[0].mxu0
          %1886 = vdwg.mxu0
          %1887 = vmatprep.subr.bf16.mxu0 0
          %1888 = vmatpush1.bf16.msra.mxu0 %v1711
          %1889 = vmatprep.subr.bf16.mxu0 0
          %1890 = vmatpush1.bf16.msra.mxu0 %v1712
          %1891 = vmatprep.subr.bf16.mxu0 0
          %1892 = vmatpush1.bf16.msra.mxu0 %v1713
          %1893 = vmatprep.subr.bf16.mxu0 0
          %1894 = vmatpush1.bf16.msra.mxu0 %v1714
          %1895 = vmatprep.subr.bf16.mxu0 0
          %1896 = vmatpush1.bf16.msra.mxu0 %v1715
          %1897 = vmatprep.subr.bf16.mxu0 0
          %1898 = vmatpush1.bf16.msra.mxu0 %v1716
          %1899 = vmatprep.subr.bf16.mxu0 0
          %1900 = vmatpush1.bf16.msra.mxu0 %v1717
          %1901 = vmatprep.subr.bf16.mxu0 0
          %1902 = vmatpush1.bf16.msra.mxu0 %v1718
          %1903 = vmatprep.subr.bf16.mxu0 0
          %1904 = vmatpush1.bf16.msra.mxu0 %v1719
          %1905 = vmatprep.subr.bf16.mxu0 0
          %1906 = vmatpush1.bf16.msra.mxu0 %v1720
          %1907 = vmatprep.subr.bf16.mxu0 0
          %1908 = vmatpush1.bf16.msra.mxu0 %v1721
          %1909 = vmatprep.subr.bf16.mxu0 0
          %1910 = vmatpush1.bf16.msra.mxu0 %v1722
          %1911 = vmatprep.subr.bf16.mxu0 0
          %1912 = vmatpush1.bf16.msra.mxu0 %v1723
          %1913 = vmatprep.subr.bf16.mxu0 0
          %1914 = vmatpush1.bf16.msra.mxu0 %v1724
          %1915 = vmatprep.subr.bf16.mxu0 0
          %1916 = vmatpush1.bf16.msra.mxu0 %v1725
          %1917 = vmatprep.subr.bf16.mxu0 0
          %1918 = vmatpush1.bf16.msra.mxu0 %v1726
          %1919 = vmatprep.mubr.bf16.mxu0 %v1285
          %1920 = vmatmul.mubr.bf16.gmra.mrb[0].mxu0 %v1284
          %v1921 = vpop.f32.mrb[0].mxu0
          %v1922 = vadd.f32 %v1882, %v1921
          %v1923 = vpop.f32.mrb[0].mxu0
          %v1924 = vpop.f32.mrb[0].mxu0
          %v1925 = vpop.f32.mrb[0].mxu0
          %1926 = vdwg.mxu0
          %1927 = vmatprep.subr.bf16.mxu0 0
          %1928 = vmatpush1.bf16.msra.mxu0 %v1727
          %1929 = vmatprep.subr.bf16.mxu0 0
          %1930 = vmatpush1.bf16.msra.mxu0 %v1728
          %1931 = vmatprep.subr.bf16.mxu0 0
          %1932 = vmatpush1.bf16.msra.mxu0 %v1729
          %1933 = vmatprep.subr.bf16.mxu0 0
          %1934 = vmatpush1.bf16.msra.mxu0 %v1730
          %1935 = vmatprep.subr.bf16.mxu0 0
          %1936 = vmatpush1.bf16.msra.mxu0 %v1731
          %1937 = vmatprep.subr.bf16.mxu0 0
          %1938 = vmatpush1.bf16.msra.mxu0 %v1732
          %1939 = vmatprep.subr.bf16.mxu0 0
          %1940 = vmatpush1.bf16.msra.mxu0 %v1733
          %1941 = vmatprep.subr.bf16.mxu0 0
          %1942 = vmatpush1.bf16.msra.mxu0 %v1734
          %1943 = vmatprep.subr.bf16.mxu0 0
          %1944 = vmatpush1.bf16.msra.mxu0 %v1735
          %1945 = vmatprep.subr.bf16.mxu0 0
          %1946 = vmatpush1.bf16.msra.mxu0 %v1736
          %1947 = vmatprep.subr.bf16.mxu0 0
          %1948 = vmatpush1.bf16.msra.mxu0 %v1737
          %1949 = vmatprep.subr.bf16.mxu0 0
          %1950 = vmatpush1.bf16.msra.mxu0 %v1738
          %1951 = vmatprep.subr.bf16.mxu0 0
          %1952 = vmatpush1.bf16.msra.mxu0 %v1739
          %1953 = vmatprep.subr.bf16.mxu0 0
          %1954 = vmatpush1.bf16.msra.mxu0 %v1740
          %1955 = vmatprep.subr.bf16.mxu0 0
          %1956 = vmatpush1.bf16.msra.mxu0 %v1741
          %1957 = vmatprep.subr.bf16.mxu0 0
          %1958 = vmatpush1.bf16.msra.mxu0 %v1742
          %1959 = vmatprep.mubr.bf16.mxu0 %v1287
          %1960 = vmatmul.mubr.bf16.gmra.mrb[0].mxu0 %v1286
          %v1961 = vpop.f32.mrb[0].mxu0
          %v1962 = vadd.f32 %v1922, %v1961
          %v1963 = vpop.f32.mrb[0].mxu0
          %v1964 = vpop.f32.mrb[0].mxu0
          %v1965 = vpop.f32.mrb[0].mxu0
          %1966 = vdwg.mxu0
          %v1967 = vsel %vm469, %v1962, -inf
          %1968 = vmax.xlane.f32.xlu0 %v1967
          %v1969 = vpop.xlane.xlu0 %1968
          %v1970 = vsub.f32 %v1962, %v1969
          %v1971 = vmul.f32 %v1970, 1.442695
          %v1972 = vpow.pop %v1971
          %v1973 = vsel %vm469, %v1972, 0.0
          %1974 = vadd.xlane.f32.xlu0 %v1973
          %v1975 = vpop.xlane.xlu0 %1974
          %v1976 = vlog2.pop %v1975
          %v1977 = vmul.f32 %v1976, 0.6931472
          %v1978 = vsub.f32 %v1970, %v1977
          %1979 = vst [vmem:[#allocation9] sm:$0x3] %v1978
        $region102: #{drug_classification_forward.1} parent=81 // pred_fallthru
          _
        // Predicated region
        $region103: #{drug_classification_forward.1} parent=81 // pred_check
          %p1980 = pneg %p232
        $region104: #{drug_classification_forward.1} parent=81 // pred_check_branch
          %1982 = sbr.rel (%p1980) target = $region106
        $region105: #{drug_classification_forward.1} parent=81 // pred_region
          %s1984 = ssub.s32 32, 32
          %1985 = vsyncadd [#allocation6], %s1984
          %s1986 = smul.addr %s26, 32
          %s1987 = scalar_lea.hbm %s8, %s1986
          %s1989 = sshll.u32 [#allocation9], 4
          %s1990 = int_to_ptr.vmem [resolvable:$true] %s1989
          %1992 = dma.vmem_to_hbm [thread:$0]  %s1990, 32, %s1987, [#allocation6]
        $region106: #{drug_classification_forward.1} parent=81 // pred_fallthru
          _
        // Predicated region
        $region107: #{drug_classification_forward.1} parent=81 // pred_check
          %p1993 = pneg %p232
        $region108: #{drug_classification_forward.1} parent=81 // pred_check_branch
          %1995 = sbr.rel (%p1993) target = $region110
        $region109: #{drug_classification_forward.1} parent=81 // pred_region
          %1996 = dma.done [#allocation6], 32
        $region110: #{drug_classification_forward.1} parent=81 // pred_fallthru
          _
      $region82: #{drug_classification_forward.1} parent=5 // pred_fallthru
        _
      %p1997 = scmp.le.s32.totalorder 2, %s17
      // Predicated region
      $region111: #{drug_classification_forward.1} parent=5 // pred_check
        %p1998 = pneg %p1997
      $region112: #{drug_classification_forward.1} parent=5 // pred_check_branch
        %2000 = sbr.rel (%p1998) target = $region114
      $region113: #{drug_classification_forward.1} parent=5 // pred_region
        %s2001 = ssub.s32 %s17, 2
      $region114: #{drug_classification_forward.1} parent=5 // pred_fallthru
        _
    $region6: #{drug_classification_forward.1} parent=1 // loop_footer
      %s21 = sadd.s32 1, %s17
    $region7: #{drug_classification_forward.1} parent=1 // loop_footer_branch
      %16 = sbr.rel target = $region3
    $region8: #{drug_classification_forward.1} parent=1 // loop_exit
      _
    %2002 = vsyncpa [#allocation5], 1
    %s2003 = scalar_lea.sflag [#allocation5], 1
    %2004 = vsyncpa %s2003, 1
    %2005 = vsyncpa [#allocation8], 1
    %2006 = vsyncpa [#allocation6], 1
    %s2007 = scalar_lea.sflag [#allocation6], 1
    %2008 = vsyncpa %s2007, 1

</llo_original>
